<compile_context>
chip_gen: v6e
topology: v6e:2x2x1
jax: 0.10.0
libtpu: 0.0.40
codegen_flags: <defaults>
</compile_context>

<pallas_src>
import jax
import jax.numpy as jnp
from jax.experimental import pallas as pl
from jax.experimental.pallas import tpu as pltpu


def _se_kernel(x_ref, w1_ref, w2_ref, o_ref):
    # x_ref: (TB, C, W), w1_ref: (C, Cr) [already pre-scaled by 1/W],
    # w2_ref: (Cr, C), o_ref: (TB, C, W)
    TB, C, W = x_ref.shape
    x = x_ref[...]                                   # single full-tile load, native dtype

    # --- Squeeze: AdaptiveAvgPool1d(1). Computed as a SUM here; the 1/W
    # factor is folded into w1 by the wrapper (sum(x) @ (w1/W) == mean(x) @ w1).
    if C % 8 == 0 and W % 128 == 0:
        # MXU path: (TB*C, W) @ (W, 1).  The leading-dim collapse is
        # layout-free (W stays on lanes); the cross-lane reduce moves off the
        # XLU onto the idle MXU, keeping the kernel memory-bound on v7x.
        ones_w = jnp.ones((W, 1), dtype=x.dtype)
        s = jnp.dot(x.reshape(TB * C, W), ones_w,
                    preferred_element_type=jnp.float32,
                    precision=jax.lax.Precision.HIGHEST)
        s = s.reshape(TB, C)
    else:
        # Fallback for ragged layouts: VPU/XLU sum (still correct).
        s = jnp.sum(x.astype(jnp.float32), axis=-1)

    # --- Excitation: Linear -> ReLU -> Linear -> Sigmoid (bias-free, as in
    # the reference nn.Module).  Tiny matmuls; HIGHEST precision keeps f32
    # accuracy and costs nothing against the HBM-bound roofline.
    h = jnp.dot(s, w1_ref[...], preferred_element_type=jnp.float32,
                precision=jax.lax.Precision.HIGHEST)
    h = jnp.maximum(h, 0.0)
    e = jnp.dot(h, w2_ref[...], preferred_element_type=jnp.float32,
                precision=jax.lax.Precision.HIGHEST)
    e = jax.nn.sigmoid(e)

    # --- Scale: cast only the tiny (TB, C) gate to the input dtype; the big
    # broadcast-multiply stays in x.dtype (no f32 full-tile intermediate).
    o_ref[...] = x * e.astype(x.dtype)[:, :, None]


def _tpu_vmem_capacity_bytes():
    """Per-core VMEM capacity; conservative (v7x-class) fallback if unknown."""
    try:
        return int(pltpu.get_tpu_info().vmem_capacity_bytes)
    except Exception:
        return 64 << 20


def _choose_tb(B, C, W, itemsize, vmem_bytes):
    """Batch rows packed per (TB, C, W) block, generation-aware.

    Big-VMEM single-TC chips (v5e/v6e, 128 MiB): one big block (~12 MiB) ->
    longer DMAs, fewer per-step overheads.  Small-VMEM megacore chips
    (v7x-class, 64 MiB, 2 TCs): cap blocks at ~6 MiB and make the grid length
    even (>= 2) so "parallel" sharding gives both TensorCores balanced work.
    """
    big_vmem = vmem_bytes >= (96 << 20)
    target_block_bytes = (12 << 20) if big_vmem else (6 << 20)
    per_batch = max(C * W * itemsize, 1)
    tb = max(1, min(B, target_block_bytes // per_batch))
    if not big_vmem and B > 1:
        g = max(pl.cdiv(B, tb), 2)
        g += g % 2                      # even number of grid steps
        tb = max(1, pl.cdiv(B, g))
    return tb


def squeeze_excitation(x, w1, w2):
    """x: [B, C, W]; w1: [C, C//r]; w2: [C//r, C].

    Weights are stored transposed relative to torch.nn.Linear's (out, in)
    layout so the kernel can do plain `s @ w`.  Both Linears are bias-free,
    exactly as in the reference module.
    """
    B, C, W = x.shape
    Cr = w1.shape[1]
    itemsize = jnp.dtype(x.dtype).itemsize

    # Fold the 1/W mean scaling into w1 (exact: mean(x) @ w1 == sum(x) @ (w1/W)).
    w1_scaled = (w1 * (1.0 / float(W))).astype(w1.dtype)

    vmem_cap = _tpu_vmem_capacity_bytes()
    TB = _choose_tb(B, C, W, itemsize, vmem_cap)
    grid = (pl.cdiv(B, TB),)

    # VMEM budget: double-buffered in + out blocks, resident weights, slack.
    block_bytes = TB * C * W * itemsize
    weight_bytes = (C * Cr + Cr * C) * jnp.dtype(w1.dtype).itemsize
    need = 4 * block_bytes + 2 * weight_bytes + (8 << 20)
    vmem_limit = int(max(16 << 20, min(need, (vmem_cap * 3) // 4)))

    return pl.pallas_call(
        _se_kernel,
        out_shape=jax.ShapeDtypeStruct((B, C, W), x.dtype),
        grid_spec=pltpu.PrefetchScalarGridSpec(
            num_scalar_prefetch=0,
            grid=grid,
            in_specs=[
                pl.BlockSpec((TB, C, W), lambda b: (b, 0, 0)),
                pl.BlockSpec((C, Cr), lambda b: (0, 0)),
                pl.BlockSpec((Cr, C), lambda b: (0, 0)),
            ],
            out_specs=pl.BlockSpec((TB, C, W), lambda b: (b, 0, 0)),
        ),
        compiler_params=pltpu.CompilerParams(
            dimension_semantics=("parallel",),
            vmem_limit_bytes=vmem_limit,
        ),
    )(x, w1_scaled, w2)


def squeeze_excitation_ref(x, w1, w2):
    s = jnp.mean(x.astype(jnp.float32), axis=-1)                       # [B, C]
    h = jnp.maximum(jnp.dot(s, w1, precision=jax.lax.Precision.HIGHEST), 0.0)
    e = jax.nn.sigmoid(jnp.dot(h, w2, precision=jax.lax.Precision.HIGHEST))
    return x * e[:, :, None].astype(x.dtype)


if __name__ == "__main__":
    # Small shapes consistent with the module: [B, C, W] with C divisible by
    # reduction=16; W=128 keeps the lane axis dense.
    B, C, W = 4, 64, 128
    reduction = 16
    Cr = C // reduction

    key = jax.random.PRNGKey(0)
    kx, k1, k2 = jax.random.split(key, 3)

    x = jax.random.normal(kx, (B, C, W), dtype=jnp.float32)
    # torch.nn.Linear weights are (out, in); we store the transposed [in, out]
    # form so the kernel can do plain `s @ w`.
    w1 = (jax.random.uniform(k1, (C, Cr), dtype=jnp.float32) - 0.5) * (2.0 / (C ** 0.5))
    w2 = (jax.random.uniform(k2, (Cr, C), dtype=jnp.float32) - 0.5) * (2.0 / (Cr ** 0.5))

    out = jax.block_until_ready(squeeze_excitation(x, w1, w2))
    ref = squeeze_excitation_ref(x, w1, w2)

    assert out.shape == (B, C, W)
    assert jnp.allclose(out, ref, atol=1e-4, rtol=1e-4), "mismatch vs reference"

    print("KERNEL_OK")
</pallas_src>

<mosaic_0001>
module attributes {stable_mosaic.version = 11 : i64} {
  func.func @_se_kernel(%arg0: i32, %arg1: memref<2x64x128xf32, #tpu.memory_space<vmem>>, %arg2: memref<64x4xf32, #tpu.memory_space<vmem>>, %arg3: memref<4x64xf32, #tpu.memory_space<vmem>>, %arg4: memref<2x64x128xf32, #tpu.memory_space<vmem>>) attributes {dimension_semantics = [#tpu.dimension_semantics<parallel>], iteration_bounds = array<i64: 2>, scalar_prefetch = 0 : i64, scratch_operands = 0 : i64, tpu.core_type = #tpu.core_type<tc>, window_params = [{transform_indices = @transform_0, window_bounds = array<i64: 2, 64, 128>}, {pipeline_mode = #tpu.pipeline_mode<synchronous>, transform_indices = @transform_1, window_bounds = array<i64: 64, 4>}, {pipeline_mode = #tpu.pipeline_mode<synchronous>, transform_indices = @transform_2, window_bounds = array<i64: 4, 64>}, {transform_indices = @transform_3, window_bounds = array<i64: 2, 64, 128>}]} {
    %c0 = arith.constant 0 : index
    %c0_0 = arith.constant 0 : index
    %c0_1 = arith.constant 0 : index
    %0 = vector.load %arg1[%c0, %c0_0, %c0_1] : memref<2x64x128xf32, #tpu.memory_space<vmem>>, vector<2x64x128xf32>
    %cst = arith.constant 1.000000e+00 : f32
    %1 = vector.broadcast %cst : f32 to vector<128x1xf32>
    %2 = vector.shape_cast %0 : vector<2x64x128xf32> to vector<128x128xf32>
    %cst_2 = arith.constant dense<0.000000e+00> : vector<128x1xf32>
    %3 = tpu.matmul %2, %1, %cst_2 {dimension_numbers = #tpu.dot_dimension_numbers<[1], [0], [0], [1], [0, 0, 1, 1], [], []>, precision = #tpu.contract_precision<fp32>} : vector<128x128xf32>, vector<128x1xf32>, vector<128x1xf32> -> vector<128x1xf32>
    %4 = vector.shape_cast %3 : vector<128x1xf32> to vector<2x64xf32>
    %c0_3 = arith.constant 0 : index
    %c0_4 = arith.constant 0 : index
    %5 = vector.load %arg2[%c0_3, %c0_4] : memref<64x4xf32, #tpu.memory_space<vmem>>, vector<64x4xf32>
    %cst_5 = arith.constant dense<0.000000e+00> : vector<2x4xf32>
    %6 = tpu.matmul %4, %5, %cst_5 {dimension_numbers = #tpu.dot_dimension_numbers<[1], [0], [0], [1], [0, 0, 1, 1], [], []>, precision = #tpu.contract_precision<fp32>} : vector<2x64xf32>, vector<64x4xf32>, vector<2x4xf32> -> vector<2x4xf32>
    %cst_6 = arith.constant 0.000000e+00 : f32
    %7 = vector.broadcast %cst_6 : f32 to vector<2x4xf32>
    %8 = arith.maximumf %6, %7 : vector<2x4xf32>
    %c0_7 = arith.constant 0 : index
    %c0_8 = arith.constant 0 : index
    %9 = vector.load %arg3[%c0_7, %c0_8] : memref<4x64xf32, #tpu.memory_space<vmem>>, vector<4x64xf32>
    %cst_9 = arith.constant dense<0.000000e+00> : vector<2x64xf32>
    %10 = tpu.matmul %8, %9, %cst_9 {dimension_numbers = #tpu.dot_dimension_numbers<[1], [0], [0], [1], [0, 0, 1, 1], [], []>, precision = #tpu.contract_precision<fp32>} : vector<2x4xf32>, vector<4x64xf32>, vector<2x64xf32> -> vector<2x64xf32>
    %11 = arith.negf %10 : vector<2x64xf32>
    %12 = math.exp %11 : vector<2x64xf32>
    %cst_10 = arith.constant 1.000000e+00 : f32
    %13 = vector.broadcast %cst_10 : f32 to vector<2x64xf32>
    %14 = arith.addf %13, %12 : vector<2x64xf32>
    %15 = arith.divf %13, %14 : vector<2x64xf32>
    %16 = vector.shape_cast %15 : vector<2x64xf32> to vector<2x64x1xf32>
    %17 = vector.broadcast %16 : vector<2x64x1xf32> to vector<2x64x128xf32>
    %18 = arith.mulf %0, %17 : vector<2x64x128xf32>
    %c0_11 = arith.constant 0 : index
    %c0_12 = arith.constant 0 : index
    %c0_13 = arith.constant 0 : index
    %19 = vector.load %arg4[%c0_11, %c0_12, %c0_13] : memref<2x64x128xf32, #tpu.memory_space<vmem>>, vector<2x64x128xf32>
    tpu.vector_store %arg4[%c0_11, %c0_12, %c0_13], %18 {strides = array<i32>} : memref<2x64x128xf32, #tpu.memory_space<vmem>>, vector<2x64x128xf32>,
    return
  }
  func.func @transform_0(%arg0: i32) -> (i32, i32, i32) {
    %c0_i32 = arith.constant 0 : i32
    %c0_i32_0 = arith.constant 0 : i32
    %c0_i32_1 = arith.constant 0 : i32
    return %arg0, %c0_i32, %c0_i32_0 : i32, i32, i32
  }
  func.func @transform_1(%arg0: i32) -> (i32, i32) {
    %c0_i32 = arith.constant 0 : i32
    %c0_i32_0 = arith.constant 0 : i32
    %c0_i32_1 = arith.constant 0 : i32
    return %c0_i32, %c0_i32_0 : i32, i32
  }
  func.func @transform_2(%arg0: i32) -> (i32, i32) {
    %c0_i32 = arith.constant 0 : i32
    %c0_i32_0 = arith.constant 0 : i32
    %c0_i32_1 = arith.constant 0 : i32
    return %c0_i32, %c0_i32_0 : i32, i32
  }
  func.func @transform_3(%arg0: i32) -> (i32, i32, i32) {
    %c0_i32 = arith.constant 0 : i32
    %c0_i32_0 = arith.constant 0 : i32
    %c0_i32_1 = arith.constant 0 : i32
    return %arg0, %c0_i32, %c0_i32_0 : i32, i32, i32
  }
}

</mosaic_0001>

<llo_original>
// kernel: tpu_custom_call.1
$region0: #{tpu_custom_call.1}
  #allocation0 [shape = 'u32[]', space=smem, size = 0x4, offset = 0x4, fixed_abs, tag = 'smem constant byte address 0x4 - core index']
  #allocation1 [shape = 'u32[144,128]{1,0:T(1,128)}', space=vmem, size = 0x12000, scoped, tag = 'internal scratch']
  %s0 = inlined_call_operand.hbm [shape: f32[4,64,128], index: 0, kind: input, shape index: {}]
  %s1 = inlined_call_operand.vmem [shape: f32[64,4], index: 1, kind: input, shape index: {}]
  %s2 = inlined_call_operand.vmem [shape: f32[4,64], index: 2, kind: input, shape index: {}]
  %s3 = inlined_call_operand.hbm [shape: f32[4,64,128], index: 3, kind: output, shape index: {}]
  %s4 = sld [smem:[#allocation0]]
  $region49: #{tpu_custom_call.1} parent=0
    _
  %s6 = ssub.s32 1, %s4
  %s7 = scalar_select 0, %s6, %s4
  $region1: #{tpu_custom_call.1} parent=0
    #allocation2 [shape = 'u8[131072]{0}', space=vmem, size = 0x20000, scoped, tag = 'input window, operand 0']
    #allocation3 [shape = 's32[2]{0}', space=sflag, size = 0x8, scoped, tag = 'scoped memory for tpu_custom_call.1']
    #allocation4 [shape = 's32[2]{0}', space=sflag, size = 0x8, scoped, tag = 'scoped memory for tpu_custom_call.1']
    #allocation5 [shape = 'u8[131072]{0}', space=vmem, size = 0x20000, scoped, tag = 'output window, operand 0']
    %8 = vsyncpa [#allocation3], 0
    %s9 = scalar_lea.sflag [#allocation3], 1
    %10 = vsyncpa %s9, 0
    %11 = vsyncpa [#allocation4], 0
    %s12 = scalar_lea.sflag [#allocation4], 1
    %13 = vsyncpa %s12, 0
    loop: start=0, step=1, limit=4
    $region2: #{tpu_custom_call.1} parent=1 // loop_pre_header
      _
    $region3: #{tpu_custom_call.1} parent=1 // loop_header
      %s15 = sphi 0, %s19
      %p16 = scmp.ge.s32.totalorder %s15, 4
      %s25 = sphi 0, %s27
      %s28 = sphi 0, %s25
      %s29 = sphi 0, %s28
      %s45 = sphi 0, %s29
      %s49 = sphi 0, %s49
      %s51 = sphi 0, %s49
      %s52 = sphi 0, %s51
      %s66 = sphi 0, %s52
      %s70 = sphi 0, %s70
      %s72 = sphi 0, %s70
      %s73 = sphi 0, %s72
      %s87 = sphi 0, %s73
      %s93 = sphi 0, %s95
      %s96 = sphi 0, %s93
      %s97 = sphi 0, %s96
      %s113 = sphi 0, %s97
    $region4: #{tpu_custom_call.1} parent=1 // loop_header_branch
      %18 = sbr.rel (%p16) target = $region8
    $region5: #{tpu_custom_call.1} parent=1 // loop_body
      %s20 = ssub.s32 %s15, 1
      %s21 = ssub.s32 %s15, 2
      %s22 = sadd.s32 %s15, 1
      %s23 = ssub.s32 %s15, %s22
      %p24 = scmp.eq.s32.totalorder %s23, 0
      %s26 = sadd.s32 %s25, 1
      %s27 = scalar_select %p24, %s25, %s26
      %p30 = pneg %p24
      %p31 = scmp.eq.s32.totalorder %s15, 1
      %p32 = por %p30, %p31
      %p33 = scmp.ne.s32.totalorder %s25, %s28
      %p34 = scmp.eq.s32.totalorder %s15, 0
      %p35 = por %p33, %p34
      %p36 = scmp.ne.s32.totalorder %s25, %s28
      %p37 = scmp.eq.s32.totalorder %s20, 1
      %p38 = por %p36, %p37
      %p39 = scmp.ne.s32.totalorder %s28, %s29
      %p40 = scmp.eq.s32.totalorder %s20, 0
      %p41 = por %p39, %p40
      %p42 = scmp.ne.s32.totalorder %s28, %s29
      %p43 = scmp.eq.s32.totalorder %s21, 1
      %p44 = por %p42, %p43
      %p46 = scmp.ne.s32.totalorder %s29, %s45
      %p47 = scmp.eq.s32.totalorder %s21, 0
      %p48 = por %p46, %p47
      %s50 = sadd.s32 %s49, 1
      %p53 = scmp.eq.s32.totalorder %s15, 1
      %p54 = scmp.ne.s32.totalorder %s49, %s51
      %p55 = scmp.eq.s32.totalorder %s15, 0
      %p56 = por %p54, %p55
      %p57 = scmp.ne.s32.totalorder %s49, %s51
      %p58 = scmp.eq.s32.totalorder %s20, 1
      %p59 = por %p57, %p58
      %p60 = scmp.ne.s32.totalorder %s51, %s52
      %p61 = scmp.eq.s32.totalorder %s20, 0
      %p62 = por %p60, %p61
      %p63 = scmp.ne.s32.totalorder %s51, %s52
      %p64 = scmp.eq.s32.totalorder %s21, 1
      %p65 = por %p63, %p64
      %p67 = scmp.ne.s32.totalorder %s52, %s66
      %p68 = scmp.eq.s32.totalorder %s21, 0
      %p69 = por %p67, %p68
      %s71 = sadd.s32 %s70, 1
      %p74 = scmp.eq.s32.totalorder %s15, 1
      %p75 = scmp.ne.s32.totalorder %s70, %s72
      %p76 = scmp.eq.s32.totalorder %s15, 0
      %p77 = por %p75, %p76
      %p78 = scmp.ne.s32.totalorder %s70, %s72
      %p79 = scmp.eq.s32.totalorder %s20, 1
      %p80 = por %p78, %p79
      %p81 = scmp.ne.s32.totalorder %s72, %s73
      %p82 = scmp.eq.s32.totalorder %s20, 0
      %p83 = por %p81, %p82
      %p84 = scmp.ne.s32.totalorder %s72, %s73
      %p85 = scmp.eq.s32.totalorder %s21, 1
      %p86 = por %p84, %p85
      %p88 = scmp.ne.s32.totalorder %s73, %s87
      %p89 = scmp.eq.s32.totalorder %s21, 0
      %p90 = por %p88, %p89
      %s91 = ssub.s32 %s15, %s22
      %p92 = scmp.eq.s32.totalorder %s91, 0
      %s94 = sadd.s32 %s93, 1
      %s95 = scalar_select %p92, %s93, %s94
      %p98 = pneg %p92
      %p99 = scmp.eq.s32.totalorder %s15, 1
      %p100 = por %p98, %p99
      %p101 = scmp.ne.s32.totalorder %s93, %s96
      %p102 = scmp.eq.s32.totalorder %s15, 0
      %p103 = por %p101, %p102
      %p104 = scmp.ne.s32.totalorder %s93, %s96
      %p105 = scmp.eq.s32.totalorder %s20, 1
      %p106 = por %p104, %p105
      %p107 = scmp.ne.s32.totalorder %s96, %s97
      %p108 = scmp.eq.s32.totalorder %s20, 0
      %p109 = por %p107, %p108
      %p110 = scmp.ne.s32.totalorder %s96, %s97
      %p111 = scmp.eq.s32.totalorder %s21, 1
      %p112 = por %p110, %p111
      %p114 = scmp.ne.s32.totalorder %s97, %s113
      %p115 = scmp.eq.s32.totalorder %s21, 0
      %p116 = por %p114, %p115
      %p117 = scmp.le.s32.totalorder 1, %s15
      %p118 = scmp.lt.s32.totalorder %s15, 3
      %p119 = pnand %p117, %p118
      %p120 = pneg %p119
      // Predicated region
      $region9: #{tpu_custom_call.1} parent=5 // pred_check
        _
      $region10: #{tpu_custom_call.1} parent=5 // pred_check_branch
        %122 = sbr.rel (%p119) target = $region12
      $region11: #{tpu_custom_call.1} parent=5 // pred_region
        %s123 = ssub.s32 %s15, 1
        // Predicated region
        $region13: #{tpu_custom_call.1} parent=11 // pred_check
          %p124 = pneg %p62
        $region14: #{tpu_custom_call.1} parent=11 // pred_check_branch
          %126 = sbr.rel (%p124) target = $region16
        $region15: #{tpu_custom_call.1} parent=11 // pred_region
          _
        $region16: #{tpu_custom_call.1} parent=11 // pred_fallthru
          _
        // Predicated region
        $region17: #{tpu_custom_call.1} parent=11 // pred_check
          %p127 = pneg %p83
        $region18: #{tpu_custom_call.1} parent=11 // pred_check_branch
          %129 = sbr.rel (%p127) target = $region20
        $region19: #{tpu_custom_call.1} parent=11 // pred_region
          _
        $region20: #{tpu_custom_call.1} parent=11 // pred_fallthru
          _
      $region12: #{tpu_custom_call.1} parent=5 // pred_fallthru
        _
      %p130 = scmp.lt.s32.totalorder %s15, 2
      // Predicated region
      $region21: #{tpu_custom_call.1} parent=5 // pred_check
        %p131 = pneg %p130
      $region22: #{tpu_custom_call.1} parent=5 // pred_check_branch
        %133 = sbr.rel (%p131) target = $region24
      $region23: #{tpu_custom_call.1} parent=5 // pred_region
        // Predicated region
        $region25: #{tpu_custom_call.1} parent=23 // pred_check
          %p134 = pneg %p35
        $region26: #{tpu_custom_call.1} parent=23 // pred_check_branch
          %136 = sbr.rel (%p134) target = $region28
        $region27: #{tpu_custom_call.1} parent=23 // pred_region
          %s137 = sand.u32 %s25, 1
          %s138 = scalar_lea.sflag [#allocation3], %s137
          %s139 = sand.u32 %s25, 1
          %s140 = smul.addr %s139, 128
          %s141 = scalar_lea.vmem [#allocation2], %s140
          %s142 = smul.u32 2, %s15
          %s144 = ssub.s32 2048, 2048
          %145 = vsyncadd %s138, %s144
          %s146 = smul.addr %s142, 8
          %s147 = smul.addr %s146, 128
          %s148 = scalar_lea.hbm %s0, %s147
          %s149 = sshll.u32 %s141, 4
          %s150 = int_to_ptr.vmem [resolvable:$true] %s149
          %155 = dma.hbm_to_vmem [thread:$0]  %s148, 2048, %s150, %s138, 128, 128, 8
        $region28: #{tpu_custom_call.1} parent=23 // pred_fallthru
          _
      $region24: #{tpu_custom_call.1} parent=5 // pred_fallthru
        _
      %p156 = scmp.le.s32.totalorder 1, %s15
      %p157 = scmp.lt.s32.totalorder %s15, 3
      %p158 = pnand %p156, %p157
      %p159 = pneg %p158
      // Predicated region
      $region29: #{tpu_custom_call.1} parent=5 // pred_check
        _
      $region30: #{tpu_custom_call.1} parent=5 // pred_check_branch
        %161 = sbr.rel (%p158) target = $region32
      $region31: #{tpu_custom_call.1} parent=5 // pred_region
        %s162 = ssub.s32 %s15, 1
        %s163 = sand.u32 %s28, 1
        %s164 = scalar_lea.sflag [#allocation3], %s163
        %s165 = sand.u32 %s28, 1
        %s166 = smul.addr %s165, 128
        %s167 = scalar_lea.vmem [#allocation2], %s166
        // Predicated region
        $region33: #{tpu_custom_call.1} parent=31 // pred_check
          %p168 = pneg %p41
        $region34: #{tpu_custom_call.1} parent=31 // pred_check_branch
          %170 = sbr.rel (%p168) target = $region36
        $region35: #{tpu_custom_call.1} parent=31 // pred_region
          %171 = dma.done %s164, 2048
        $region36: #{tpu_custom_call.1} parent=31 // pred_fallthru
          _
        %s172 = sand.u32 %s28, 1
        %s173 = scalar_lea.sflag [#allocation3], %s172
        %s174 = sand.u32 %s28, 1
        %s175 = smul.addr %s174, 128
        %s176 = scalar_lea.vmem [#allocation2], %s175
        %p177 = pneg %p41
        %p178 = pneg %p38
        %p179 = pneg %p62
        %p180 = pneg %p59
        %p181 = pneg %p83
        %p182 = pneg %p80
        %p183 = pneg %p109
        %p184 = pneg %p106
        %s185 = sand.u32 %s96, 1
        %s186 = scalar_lea.sflag [#allocation4], %s185
        %s187 = sand.u32 %s96, 1
        %s188 = smul.addr %s187, 128
        %s189 = scalar_lea.vmem [#allocation5], %s188
        %s190 = smul.u32 2, %s20
        %s191 = smul.u32 2, %s20
        %v192 = vld [vmem:[%s167] sm:$0xff]
        %v193 = vld [vmem:[%s167 + $0x8] sm:$0xff]
        %v194 = vld [vmem:[%s167 + $0x10] sm:$0xff]
        %v195 = vld [vmem:[%s167 + $0x18] sm:$0xff]
        %v196 = vld [vmem:[%s167 + $0x20] sm:$0xff]
        %v197 = vld [vmem:[%s167 + $0x28] sm:$0xff]
        %v198 = vld [vmem:[%s167 + $0x30] sm:$0xff]
        %v199 = vld [vmem:[%s167 + $0x38] sm:$0xff]
        %v200 = vld [vmem:[%s167 + $0x40] sm:$0xff]
        %v201 = vld [vmem:[%s167 + $0x48] sm:$0xff]
        %v202 = vld [vmem:[%s167 + $0x50] sm:$0xff]
        %v203 = vld [vmem:[%s167 + $0x58] sm:$0xff]
        %v204 = vld [vmem:[%s167 + $0x60] sm:$0xff]
        %v205 = vld [vmem:[%s167 + $0x68] sm:$0xff]
        %v206 = vld [vmem:[%s167 + $0x70] sm:$0xff]
        %v207 = vld [vmem:[%s167 + $0x78] sm:$0xff]
        %208 = vmatprep.subr.mxu0 0.0
        %209 = vmatpush1.msra.mxu0 1.0
        %210 = vmatprep.subr.mxu0 0.0
        %211 = vmatpush1.msra.mxu0 1.0
        %212 = vmatprep.subr.mxu0 0.0
        %213 = vmatpush1.msra.mxu0 1.0
        %214 = vmatprep.subr.mxu0 0.0
        %215 = vmatpush1.msra.mxu0 1.0
        %216 = vmatprep.subr.mxu0 0.0
        %217 = vmatpush1.msra.mxu0 1.0
        %218 = vmatprep.subr.mxu0 0.0
        %219 = vmatpush1.msra.mxu0 1.0
        %220 = vmatprep.subr.mxu0 0.0
        %221 = vmatpush1.msra.mxu0 1.0
        %222 = vmatprep.subr.mxu0 0.0
        %223 = vmatpush1.msra.mxu0 1.0
        %224 = vmatprep.subr.mxu0 0.0
        %225 = vmatpush1.msra.mxu0 1.0
        %226 = vmatprep.subr.mxu0 0.0
        %227 = vmatpush1.msra.mxu0 1.0
        %228 = vmatprep.subr.mxu0 0.0
        %229 = vmatpush1.msra.mxu0 1.0
        %230 = vmatprep.subr.mxu0 0.0
        %231 = vmatpush1.msra.mxu0 1.0
        %232 = vmatprep.subr.mxu0 0.0
        %233 = vmatpush1.msra.mxu0 1.0
        %234 = vmatprep.subr.mxu0 0.0
        %235 = vmatpush1.msra.mxu0 1.0
        %236 = vmatprep.subr.mxu0 0.0
        %237 = vmatpush1.msra.mxu0 1.0
        %238 = vmatprep.subr.mxu0 0.0
        %239 = vmatpush1.msra.mxu0 1.0
        %240 = vmatprep.subr.mxu0 0.0
        %241 = vmatpush2.msra.mxu0 0.0
        %242 = vmatprep.subr.mxu0 0.0
        %243 = vmatpush2.msra.mxu0 0.0
        %244 = vmatprep.subr.mxu0 0.0
        %245 = vmatpush2.msra.mxu0 0.0
        %246 = vmatprep.subr.mxu0 0.0
        %247 = vmatpush2.msra.mxu0 0.0
        %248 = vmatprep.subr.mxu0 0.0
        %249 = vmatpush2.msra.mxu0 0.0
        %250 = vmatprep.subr.mxu0 0.0
        %251 = vmatpush2.msra.mxu0 0.0
        %252 = vmatprep.subr.mxu0 0.0
        %253 = vmatpush2.msra.mxu0 0.0
        %254 = vmatprep.subr.mxu0 0.0
        %255 = vmatpush2.msra.mxu0 0.0
        %256 = vmatprep.subr.mxu0 0.0
        %257 = vmatpush2.msra.mxu0 0.0
        %258 = vmatprep.subr.mxu0 0.0
        %259 = vmatpush2.msra.mxu0 0.0
        %260 = vmatprep.subr.mxu0 0.0
        %261 = vmatpush2.msra.mxu0 0.0
        %262 = vmatprep.subr.mxu0 0.0
        %263 = vmatpush2.msra.mxu0 0.0
        %264 = vmatprep.subr.mxu0 0.0
        %265 = vmatpush2.msra.mxu0 0.0
        %266 = vmatprep.subr.mxu0 0.0
        %267 = vmatpush2.msra.mxu0 0.0
        %268 = vmatprep.subr.mxu0 0.0
        %269 = vmatpush2.msra.mxu0 0.0
        %270 = vmatprep.subr.mxu0 0.0
        %271 = vmatpush2.msra.mxu0 0.0
        %272 = vmatprep.mubr.f32.mxu0 0.0
        %v273 = vand.u32 %v192, 4294901760
        %v274 = vsub.f32 %v192, %v273
        %v275 = vand.u32 %v274, 4294901760
        %v276 = vsub.f32 %v274, %v275
        %v277 = vand.u32 %v276, 4294901760
        %278 = vmatmul.mubr.f32.gmra.mxu0 %v277
        %v279 = vpop.f32.mrf.mxu0
        %v280 = vadd.f32 0.0, %v279
        %v281 = vpop.f32.mrf.mxu0
        %282 = vmatprep.mubr.f32.mxu0 0.0
        %v283 = vand.u32 %v193, 4294901760
        %v284 = vsub.f32 %v193, %v283
        %v285 = vand.u32 %v284, 4294901760
        %v286 = vsub.f32 %v284, %v285
        %v287 = vand.u32 %v286, 4294901760
        %288 = vmatmul.mubr.f32.gmra.mxu0 %v287
        %v289 = vpop.f32.mrf.mxu0
        %v290 = vadd.f32 0.0, %v289
        %v291 = vpop.f32.mrf.mxu0
        %292 = vmatprep.mubr.f32.mxu0 0.0
        %v293 = vand.u32 %v194, 4294901760
        %v294 = vsub.f32 %v194, %v293
        %v295 = vand.u32 %v294, 4294901760
        %v296 = vsub.f32 %v294, %v295
        %v297 = vand.u32 %v296, 4294901760
        %298 = vmatmul.mubr.f32.gmra.mxu0 %v297
        %v299 = vpop.f32.mrf.mxu0
        %v300 = vadd.f32 0.0, %v299
        %v301 = vpop.f32.mrf.mxu0
        %302 = vmatprep.mubr.f32.mxu0 0.0
        %v303 = vand.u32 %v195, 4294901760
        %v304 = vsub.f32 %v195, %v303
        %v305 = vand.u32 %v304, 4294901760
        %v306 = vsub.f32 %v304, %v305
        %v307 = vand.u32 %v306, 4294901760
        %308 = vmatmul.mubr.f32.gmra.mxu0 %v307
        %v309 = vpop.f32.mrf.mxu0
        %v310 = vadd.f32 0.0, %v309
        %v311 = vpop.f32.mrf.mxu0
        %312 = vmatprep.mubr.f32.mxu0 0.0
        %v313 = vand.u32 %v196, 4294901760
        %v314 = vsub.f32 %v196, %v313
        %v315 = vand.u32 %v314, 4294901760
        %v316 = vsub.f32 %v314, %v315
        %v317 = vand.u32 %v316, 4294901760
        %318 = vmatmul.mubr.f32.gmra.mxu0 %v317
        %v319 = vpop.f32.mrf.mxu0
        %v320 = vadd.f32 0.0, %v319
        %v321 = vpop.f32.mrf.mxu0
        %322 = vmatprep.mubr.f32.mxu0 0.0
        %v323 = vand.u32 %v197, 4294901760
        %v324 = vsub.f32 %v197, %v323
        %v325 = vand.u32 %v324, 4294901760
        %v326 = vsub.f32 %v324, %v325
        %v327 = vand.u32 %v326, 4294901760
        %328 = vmatmul.mubr.f32.gmra.mxu0 %v327
        %v329 = vpop.f32.mrf.mxu0
        %v330 = vadd.f32 0.0, %v329
        %v331 = vpop.f32.mrf.mxu0
        %332 = vmatprep.mubr.f32.mxu0 0.0
        %v333 = vand.u32 %v198, 4294901760
        %v334 = vsub.f32 %v198, %v333
        %v335 = vand.u32 %v334, 4294901760
        %v336 = vsub.f32 %v334, %v335
        %v337 = vand.u32 %v336, 4294901760
        %338 = vmatmul.mubr.f32.gmra.mxu0 %v337
        %v339 = vpop.f32.mrf.mxu0
        %v340 = vadd.f32 0.0, %v339
        %v341 = vpop.f32.mrf.mxu0
        %342 = vmatprep.mubr.f32.mxu0 0.0
        %v343 = vand.u32 %v199, 4294901760
        %v344 = vsub.f32 %v199, %v343
        %v345 = vand.u32 %v344, 4294901760
        %v346 = vsub.f32 %v344, %v345
        %v347 = vand.u32 %v346, 4294901760
        %348 = vmatmul.mubr.f32.gmra.mxu0 %v347
        %v349 = vpop.f32.mrf.mxu0
        %v350 = vadd.f32 0.0, %v349
        %v351 = vpop.f32.mrf.mxu0
        %352 = vmatprep.mubr.f32.mxu0 0.0
        %v353 = vand.u32 %v200, 4294901760
        %v354 = vsub.f32 %v200, %v353
        %v355 = vand.u32 %v354, 4294901760
        %v356 = vsub.f32 %v354, %v355
        %v357 = vand.u32 %v356, 4294901760
        %358 = vmatmul.mubr.f32.gmra.mxu0 %v357
        %v359 = vpop.f32.mrf.mxu0
        %v360 = vadd.f32 0.0, %v359
        %v361 = vpop.f32.mrf.mxu0
        %362 = vmatprep.mubr.f32.mxu0 0.0
        %v363 = vand.u32 %v201, 4294901760
        %v364 = vsub.f32 %v201, %v363
        %v365 = vand.u32 %v364, 4294901760
        %v366 = vsub.f32 %v364, %v365
        %v367 = vand.u32 %v366, 4294901760
        %368 = vmatmul.mubr.f32.gmra.mxu0 %v367
        %v369 = vpop.f32.mrf.mxu0
        %v370 = vadd.f32 0.0, %v369
        %v371 = vpop.f32.mrf.mxu0
        %372 = vmatprep.mubr.f32.mxu0 0.0
        %v373 = vand.u32 %v202, 4294901760
        %v374 = vsub.f32 %v202, %v373
        %v375 = vand.u32 %v374, 4294901760
        %v376 = vsub.f32 %v374, %v375
        %v377 = vand.u32 %v376, 4294901760
        %378 = vmatmul.mubr.f32.gmra.mxu0 %v377
        %v379 = vpop.f32.mrf.mxu0
        %v380 = vadd.f32 0.0, %v379
        %v381 = vpop.f32.mrf.mxu0
        %382 = vmatprep.mubr.f32.mxu0 0.0
        %v383 = vand.u32 %v203, 4294901760
        %v384 = vsub.f32 %v203, %v383
        %v385 = vand.u32 %v384, 4294901760
        %v386 = vsub.f32 %v384, %v385
        %v387 = vand.u32 %v386, 4294901760
        %388 = vmatmul.mubr.f32.gmra.mxu0 %v387
        %v389 = vpop.f32.mrf.mxu0
        %v390 = vadd.f32 0.0, %v389
        %v391 = vpop.f32.mrf.mxu0
        %392 = vmatprep.mubr.f32.mxu0 0.0
        %v393 = vand.u32 %v204, 4294901760
        %v394 = vsub.f32 %v204, %v393
        %v395 = vand.u32 %v394, 4294901760
        %v396 = vsub.f32 %v394, %v395
        %v397 = vand.u32 %v396, 4294901760
        %398 = vmatmul.mubr.f32.gmra.mxu0 %v397
        %v399 = vpop.f32.mrf.mxu0
        %v400 = vadd.f32 0.0, %v399
        %v401 = vpop.f32.mrf.mxu0
        %402 = vmatprep.mubr.f32.mxu0 0.0
        %v403 = vand.u32 %v205, 4294901760
        %v404 = vsub.f32 %v205, %v403
        %v405 = vand.u32 %v404, 4294901760
        %v406 = vsub.f32 %v404, %v405
        %v407 = vand.u32 %v406, 4294901760
        %408 = vmatmul.mubr.f32.gmra.mxu0 %v407
        %v409 = vpop.f32.mrf.mxu0
        %v410 = vadd.f32 0.0, %v409
        %v411 = vpop.f32.mrf.mxu0
        %412 = vmatprep.mubr.f32.mxu0 0.0
        %v413 = vand.u32 %v206, 4294901760
        %v414 = vsub.f32 %v206, %v413
        %v415 = vand.u32 %v414, 4294901760
        %v416 = vsub.f32 %v414, %v415
        %v417 = vand.u32 %v416, 4294901760
        %418 = vmatmul.mubr.f32.gmra.mxu0 %v417
        %v419 = vpop.f32.mrf.mxu0
        %v420 = vadd.f32 0.0, %v419
        %v421 = vpop.f32.mrf.mxu0
        %422 = vmatprep.mubr.f32.mxu0 0.0
        %v423 = vand.u32 %v207, 4294901760
        %v424 = vsub.f32 %v207, %v423
        %v425 = vand.u32 %v424, 4294901760
        %v426 = vsub.f32 %v424, %v425
        %v427 = vand.u32 %v426, 4294901760
        %428 = vmatmul.mubr.f32.gmra.mxu0 %v427
        %v429 = vpop.f32.mrf.mxu0
        %v430 = vadd.f32 0.0, %v429
        %v431 = vpop.f32.mrf.mxu0
        %432 = vdwg.mxu0
        %433 = vmatprep.subr.mxu0 0.0
        %434 = vmatpush1.msra.mxu0 0.0
        %435 = vmatprep.subr.mxu0 0.0
        %436 = vmatpush1.msra.mxu0 0.0
        %437 = vmatprep.subr.mxu0 0.0
        %438 = vmatpush1.msra.mxu0 0.0
        %439 = vmatprep.subr.mxu0 0.0
        %440 = vmatpush1.msra.mxu0 0.0
        %441 = vmatprep.subr.mxu0 0.0
        %442 = vmatpush1.msra.mxu0 0.0
        %443 = vmatprep.subr.mxu0 0.0
        %444 = vmatpush1.msra.mxu0 0.0
        %445 = vmatprep.subr.mxu0 0.0
        %446 = vmatpush1.msra.mxu0 0.0
        %447 = vmatprep.subr.mxu0 0.0
        %448 = vmatpush1.msra.mxu0 0.0
        %449 = vmatprep.subr.mxu0 0.0
        %450 = vmatpush1.msra.mxu0 0.0
        %451 = vmatprep.subr.mxu0 0.0
        %452 = vmatpush1.msra.mxu0 0.0
        %453 = vmatprep.subr.mxu0 0.0
        %454 = vmatpush1.msra.mxu0 0.0
        %455 = vmatprep.subr.mxu0 0.0
        %456 = vmatpush1.msra.mxu0 0.0
        %457 = vmatprep.subr.mxu0 0.0
        %458 = vmatpush1.msra.mxu0 0.0
        %459 = vmatprep.subr.mxu0 0.0
        %460 = vmatpush1.msra.mxu0 0.0
        %461 = vmatprep.subr.mxu0 0.0
        %462 = vmatpush1.msra.mxu0 0.0
        %463 = vmatprep.subr.mxu0 0.0
        %464 = vmatpush1.msra.mxu0 0.0
        %465 = vmatprep.subr.mxu0 0.0
        %466 = vmatpush2.msra.mxu0 0.0
        %467 = vmatprep.subr.mxu0 0.0
        %468 = vmatpush2.msra.mxu0 0.0
        %469 = vmatprep.subr.mxu0 0.0
        %470 = vmatpush2.msra.mxu0 0.0
        %471 = vmatprep.subr.mxu0 0.0
        %472 = vmatpush2.msra.mxu0 0.0
        %473 = vmatprep.subr.mxu0 0.0
        %474 = vmatpush2.msra.mxu0 0.0
        %475 = vmatprep.subr.mxu0 0.0
        %476 = vmatpush2.msra.mxu0 0.0
        %477 = vmatprep.subr.mxu0 0.0
        %478 = vmatpush2.msra.mxu0 0.0
        %479 = vmatprep.subr.mxu0 0.0
        %480 = vmatpush2.msra.mxu0 0.0
        %481 = vmatprep.subr.mxu0 0.0
        %482 = vmatpush2.msra.mxu0 0.0
        %483 = vmatprep.subr.mxu0 0.0
        %484 = vmatpush2.msra.mxu0 0.0
        %485 = vmatprep.subr.mxu0 0.0
        %486 = vmatpush2.msra.mxu0 0.0
        %487 = vmatprep.subr.mxu0 0.0
        %488 = vmatpush2.msra.mxu0 0.0
        %489 = vmatprep.subr.mxu0 0.0
        %490 = vmatpush2.msra.mxu0 0.0
        %491 = vmatprep.subr.mxu0 0.0
        %492 = vmatpush2.msra.mxu0 0.0
        %493 = vmatprep.subr.mxu0 0.0
        %494 = vmatpush2.msra.mxu0 0.0
        %495 = vmatprep.subr.mxu0 0.0
        %496 = vmatpush2.msra.mxu0 0.0
        %497 = vmatprep.mubr.f32.mxu0 0.0
        %v498 = vand.u32 %v192, 4294901760
        %499 = vmatmul.mubr.f32.gmra.mxu0 %v498
        %v500 = vpop.f32.mrf.mxu0
        %v501 = vadd.f32 %v280, %v500
        %v502 = vpop.f32.mrf.mxu0
        %503 = vmatprep.mubr.f32.mxu0 0.0
        %v504 = vand.u32 %v193, 4294901760
        %505 = vmatmul.mubr.f32.gmra.mxu0 %v504
        %v506 = vpop.f32.mrf.mxu0
        %v507 = vadd.f32 %v290, %v506
        %v508 = vpop.f32.mrf.mxu0
        %509 = vmatprep.mubr.f32.mxu0 0.0
        %v510 = vand.u32 %v194, 4294901760
        %511 = vmatmul.mubr.f32.gmra.mxu0 %v510
        %v512 = vpop.f32.mrf.mxu0
        %v513 = vadd.f32 %v300, %v512
        %v514 = vpop.f32.mrf.mxu0
        %515 = vmatprep.mubr.f32.mxu0 0.0
        %v516 = vand.u32 %v195, 4294901760
        %517 = vmatmul.mubr.f32.gmra.mxu0 %v516
        %v518 = vpop.f32.mrf.mxu0
        %v519 = vadd.f32 %v310, %v518
        %v520 = vpop.f32.mrf.mxu0
        %521 = vmatprep.mubr.f32.mxu0 0.0
        %v522 = vand.u32 %v196, 4294901760
        %523 = vmatmul.mubr.f32.gmra.mxu0 %v522
        %v524 = vpop.f32.mrf.mxu0
        %v525 = vadd.f32 %v320, %v524
        %v526 = vpop.f32.mrf.mxu0
        %527 = vmatprep.mubr.f32.mxu0 0.0
        %v528 = vand.u32 %v197, 4294901760
        %529 = vmatmul.mubr.f32.gmra.mxu0 %v528
        %v530 = vpop.f32.mrf.mxu0
        %v531 = vadd.f32 %v330, %v530
        %v532 = vpop.f32.mrf.mxu0
        %533 = vmatprep.mubr.f32.mxu0 0.0
        %v534 = vand.u32 %v198, 4294901760
        %535 = vmatmul.mubr.f32.gmra.mxu0 %v534
        %v536 = vpop.f32.mrf.mxu0
        %v537 = vadd.f32 %v340, %v536
        %v538 = vpop.f32.mrf.mxu0
        %539 = vmatprep.mubr.f32.mxu0 0.0
        %v540 = vand.u32 %v199, 4294901760
        %541 = vmatmul.mubr.f32.gmra.mxu0 %v540
        %v542 = vpop.f32.mrf.mxu0
        %v543 = vadd.f32 %v350, %v542
        %v544 = vpop.f32.mrf.mxu0
        %545 = vmatprep.mubr.f32.mxu0 0.0
        %v546 = vand.u32 %v200, 4294901760
        %547 = vmatmul.mubr.f32.gmra.mxu0 %v546
        %v548 = vpop.f32.mrf.mxu0
        %v549 = vadd.f32 %v360, %v548
        %v550 = vpop.f32.mrf.mxu0
        %551 = vmatprep.mubr.f32.mxu0 0.0
        %v552 = vand.u32 %v201, 4294901760
        %553 = vmatmul.mubr.f32.gmra.mxu0 %v552
        %v554 = vpop.f32.mrf.mxu0
        %v555 = vadd.f32 %v370, %v554
        %v556 = vpop.f32.mrf.mxu0
        %557 = vmatprep.mubr.f32.mxu0 0.0
        %v558 = vand.u32 %v202, 4294901760
        %559 = vmatmul.mubr.f32.gmra.mxu0 %v558
        %v560 = vpop.f32.mrf.mxu0
        %v561 = vadd.f32 %v380, %v560
        %v562 = vpop.f32.mrf.mxu0
        %563 = vmatprep.mubr.f32.mxu0 0.0
        %v564 = vand.u32 %v203, 4294901760
        %565 = vmatmul.mubr.f32.gmra.mxu0 %v564
        %v566 = vpop.f32.mrf.mxu0
        %v567 = vadd.f32 %v390, %v566
        %v568 = vpop.f32.mrf.mxu0
        %569 = vmatprep.mubr.f32.mxu0 0.0
        %v570 = vand.u32 %v204, 4294901760
        %571 = vmatmul.mubr.f32.gmra.mxu0 %v570
        %v572 = vpop.f32.mrf.mxu0
        %v573 = vadd.f32 %v400, %v572
        %v574 = vpop.f32.mrf.mxu0
        %575 = vmatprep.mubr.f32.mxu0 0.0
        %v576 = vand.u32 %v205, 4294901760
        %577 = vmatmul.mubr.f32.gmra.mxu0 %v576
        %v578 = vpop.f32.mrf.mxu0
        %v579 = vadd.f32 %v410, %v578
        %v580 = vpop.f32.mrf.mxu0
        %581 = vmatprep.mubr.f32.mxu0 0.0
        %v582 = vand.u32 %v206, 4294901760
        %583 = vmatmul.mubr.f32.gmra.mxu0 %v582
        %v584 = vpop.f32.mrf.mxu0
        %v585 = vadd.f32 %v420, %v584
        %v586 = vpop.f32.mrf.mxu0
        %587 = vmatprep.mubr.f32.mxu0 0.0
        %v588 = vand.u32 %v207, 4294901760
        %589 = vmatmul.mubr.f32.gmra.mxu0 %v588
        %v590 = vpop.f32.mrf.mxu0
        %v591 = vadd.f32 %v430, %v590
        %v592 = vpop.f32.mrf.mxu0
        %593 = vdwg.mxu0
        %594 = vmatprep.subr.mxu0 0.0
        %595 = vmatpush1.msra.mxu0 0.0
        %596 = vmatprep.subr.mxu0 0.0
        %597 = vmatpush1.msra.mxu0 0.0
        %598 = vmatprep.subr.mxu0 0.0
        %599 = vmatpush1.msra.mxu0 0.0
        %600 = vmatprep.subr.mxu0 0.0
        %601 = vmatpush1.msra.mxu0 0.0
        %602 = vmatprep.subr.mxu0 0.0
        %603 = vmatpush1.msra.mxu0 0.0
        %604 = vmatprep.subr.mxu0 0.0
        %605 = vmatpush1.msra.mxu0 0.0
        %606 = vmatprep.subr.mxu0 0.0
        %607 = vmatpush1.msra.mxu0 0.0
        %608 = vmatprep.subr.mxu0 0.0
        %609 = vmatpush1.msra.mxu0 0.0
        %610 = vmatprep.subr.mxu0 0.0
        %611 = vmatpush1.msra.mxu0 0.0
        %612 = vmatprep.subr.mxu0 0.0
        %613 = vmatpush1.msra.mxu0 0.0
        %614 = vmatprep.subr.mxu0 0.0
        %615 = vmatpush1.msra.mxu0 0.0
        %616 = vmatprep.subr.mxu0 0.0
        %617 = vmatpush1.msra.mxu0 0.0
        %618 = vmatprep.subr.mxu0 0.0
        %619 = vmatpush1.msra.mxu0 0.0
        %620 = vmatprep.subr.mxu0 0.0
        %621 = vmatpush1.msra.mxu0 0.0
        %622 = vmatprep.subr.mxu0 0.0
        %623 = vmatpush1.msra.mxu0 0.0
        %624 = vmatprep.subr.mxu0 0.0
        %625 = vmatpush1.msra.mxu0 0.0
        %626 = vmatprep.subr.mxu0 0.0
        %627 = vmatpush2.msra.mxu0 0.0
        %628 = vmatprep.subr.mxu0 0.0
        %629 = vmatpush2.msra.mxu0 0.0
        %630 = vmatprep.subr.mxu0 0.0
        %631 = vmatpush2.msra.mxu0 0.0
        %632 = vmatprep.subr.mxu0 0.0
        %633 = vmatpush2.msra.mxu0 0.0
        %634 = vmatprep.subr.mxu0 0.0
        %635 = vmatpush2.msra.mxu0 0.0
        %636 = vmatprep.subr.mxu0 0.0
        %637 = vmatpush2.msra.mxu0 0.0
        %638 = vmatprep.subr.mxu0 0.0
        %639 = vmatpush2.msra.mxu0 0.0
        %640 = vmatprep.subr.mxu0 0.0
        %641 = vmatpush2.msra.mxu0 0.0
        %642 = vmatprep.subr.mxu0 0.0
        %643 = vmatpush2.msra.mxu0 0.0
        %644 = vmatprep.subr.mxu0 0.0
        %645 = vmatpush2.msra.mxu0 0.0
        %646 = vmatprep.subr.mxu0 0.0
        %647 = vmatpush2.msra.mxu0 0.0
        %648 = vmatprep.subr.mxu0 0.0
        %649 = vmatpush2.msra.mxu0 0.0
        %650 = vmatprep.subr.mxu0 0.0
        %651 = vmatpush2.msra.mxu0 0.0
        %652 = vmatprep.subr.mxu0 0.0
        %653 = vmatpush2.msra.mxu0 0.0
        %654 = vmatprep.subr.mxu0 0.0
        %655 = vmatpush2.msra.mxu0 0.0
        %656 = vmatprep.subr.mxu0 0.0
        %657 = vmatpush2.msra.mxu0 0.0
        %658 = vmatprep.mubr.f32.mxu0 0.0
        %v659 = vand.u32 %v192, 4294901760
        %v660 = vsub.f32 %v192, %v659
        %661 = vmatmul.mubr.f32.gmra.mxu0 %v660
        %v662 = vpop.f32.mrf.mxu0
        %v663 = vadd.f32 %v501, %v662
        %v664 = vpop.f32.mrf.mxu0
        %665 = vmatprep.mubr.f32.mxu0 0.0
        %v666 = vand.u32 %v193, 4294901760
        %v667 = vsub.f32 %v193, %v666
        %668 = vmatmul.mubr.f32.gmra.mxu0 %v667
        %v669 = vpop.f32.mrf.mxu0
        %v670 = vadd.f32 %v507, %v669
        %v671 = vpop.f32.mrf.mxu0
        %672 = vmatprep.mubr.f32.mxu0 0.0
        %v673 = vand.u32 %v194, 4294901760
        %v674 = vsub.f32 %v194, %v673
        %675 = vmatmul.mubr.f32.gmra.mxu0 %v674
        %v676 = vpop.f32.mrf.mxu0
        %v677 = vadd.f32 %v513, %v676
        %v678 = vpop.f32.mrf.mxu0
        %679 = vmatprep.mubr.f32.mxu0 0.0
        %v680 = vand.u32 %v195, 4294901760
        %v681 = vsub.f32 %v195, %v680
        %682 = vmatmul.mubr.f32.gmra.mxu0 %v681
        %v683 = vpop.f32.mrf.mxu0
        %v684 = vadd.f32 %v519, %v683
        %v685 = vpop.f32.mrf.mxu0
        %686 = vmatprep.mubr.f32.mxu0 0.0
        %v687 = vand.u32 %v196, 4294901760
        %v688 = vsub.f32 %v196, %v687
        %689 = vmatmul.mubr.f32.gmra.mxu0 %v688
        %v690 = vpop.f32.mrf.mxu0
        %v691 = vadd.f32 %v525, %v690
        %v692 = vpop.f32.mrf.mxu0
        %693 = vmatprep.mubr.f32.mxu0 0.0
        %v694 = vand.u32 %v197, 4294901760
        %v695 = vsub.f32 %v197, %v694
        %696 = vmatmul.mubr.f32.gmra.mxu0 %v695
        %v697 = vpop.f32.mrf.mxu0
        %v698 = vadd.f32 %v531, %v697
        %v699 = vpop.f32.mrf.mxu0
        %700 = vmatprep.mubr.f32.mxu0 0.0
        %v701 = vand.u32 %v198, 4294901760
        %v702 = vsub.f32 %v198, %v701
        %703 = vmatmul.mubr.f32.gmra.mxu0 %v702
        %v704 = vpop.f32.mrf.mxu0
        %v705 = vadd.f32 %v537, %v704
        %v706 = vpop.f32.mrf.mxu0
        %707 = vmatprep.mubr.f32.mxu0 0.0
        %v708 = vand.u32 %v199, 4294901760
        %v709 = vsub.f32 %v199, %v708
        %710 = vmatmul.mubr.f32.gmra.mxu0 %v709
        %v711 = vpop.f32.mrf.mxu0
        %v712 = vadd.f32 %v543, %v711
        %v713 = vpop.f32.mrf.mxu0
        %714 = vmatprep.mubr.f32.mxu0 0.0
        %v715 = vand.u32 %v200, 4294901760
        %v716 = vsub.f32 %v200, %v715
        %717 = vmatmul.mubr.f32.gmra.mxu0 %v716
        %v718 = vpop.f32.mrf.mxu0
        %v719 = vadd.f32 %v549, %v718
        %v720 = vpop.f32.mrf.mxu0
        %721 = vmatprep.mubr.f32.mxu0 0.0
        %v722 = vand.u32 %v201, 4294901760
        %v723 = vsub.f32 %v201, %v722
        %724 = vmatmul.mubr.f32.gmra.mxu0 %v723
        %v725 = vpop.f32.mrf.mxu0
        %v726 = vadd.f32 %v555, %v725
        %v727 = vpop.f32.mrf.mxu0
        %728 = vmatprep.mubr.f32.mxu0 0.0
        %v729 = vand.u32 %v202, 4294901760
        %v730 = vsub.f32 %v202, %v729
        %731 = vmatmul.mubr.f32.gmra.mxu0 %v730
        %v732 = vpop.f32.mrf.mxu0
        %v733 = vadd.f32 %v561, %v732
        %v734 = vpop.f32.mrf.mxu0
        %735 = vmatprep.mubr.f32.mxu0 0.0
        %v736 = vand.u32 %v203, 4294901760
        %v737 = vsub.f32 %v203, %v736
        %738 = vmatmul.mubr.f32.gmra.mxu0 %v737
        %v739 = vpop.f32.mrf.mxu0
        %v740 = vadd.f32 %v567, %v739
        %v741 = vpop.f32.mrf.mxu0
        %742 = vmatprep.mubr.f32.mxu0 0.0
        %v743 = vand.u32 %v204, 4294901760
        %v744 = vsub.f32 %v204, %v743
        %745 = vmatmul.mubr.f32.gmra.mxu0 %v744
        %v746 = vpop.f32.mrf.mxu0
        %v747 = vadd.f32 %v573, %v746
        %v748 = vpop.f32.mrf.mxu0
        %749 = vmatprep.mubr.f32.mxu0 0.0
        %v750 = vand.u32 %v205, 4294901760
        %v751 = vsub.f32 %v205, %v750
        %752 = vmatmul.mubr.f32.gmra.mxu0 %v751
        %v753 = vpop.f32.mrf.mxu0
        %v754 = vadd.f32 %v579, %v753
        %v755 = vpop.f32.mrf.mxu0
        %756 = vmatprep.mubr.f32.mxu0 0.0
        %v757 = vand.u32 %v206, 4294901760
        %v758 = vsub.f32 %v206, %v757
        %759 = vmatmul.mubr.f32.gmra.mxu0 %v758
        %v760 = vpop.f32.mrf.mxu0
        %v761 = vadd.f32 %v585, %v760
        %v762 = vpop.f32.mrf.mxu0
        %763 = vmatprep.mubr.f32.mxu0 0.0
        %v764 = vand.u32 %v207, 4294901760
        %v765 = vsub.f32 %v207, %v764
        %766 = vmatmul.mubr.f32.gmra.mxu0 %v765
        %v767 = vpop.f32.mrf.mxu0
        %v768 = vadd.f32 %v591, %v767
        %v769 = vpop.f32.mrf.mxu0
        %770 = vdwg.mxu0
        %771 = vmatprep.subr.mxu0 0.0
        %772 = vmatpush1.msra.mxu0 1.0
        %773 = vmatprep.subr.mxu0 0.0
        %774 = vmatpush1.msra.mxu0 1.0
        %775 = vmatprep.subr.mxu0 0.0
        %776 = vmatpush1.msra.mxu0 1.0
        %777 = vmatprep.subr.mxu0 0.0
        %778 = vmatpush1.msra.mxu0 1.0
        %779 = vmatprep.subr.mxu0 0.0
        %780 = vmatpush1.msra.mxu0 1.0
        %781 = vmatprep.subr.mxu0 0.0
        %782 = vmatpush1.msra.mxu0 1.0
        %783 = vmatprep.subr.mxu0 0.0
        %784 = vmatpush1.msra.mxu0 1.0
        %785 = vmatprep.subr.mxu0 0.0
        %786 = vmatpush1.msra.mxu0 1.0
        %787 = vmatprep.subr.mxu0 0.0
        %788 = vmatpush1.msra.mxu0 1.0
        %789 = vmatprep.subr.mxu0 0.0
        %790 = vmatpush1.msra.mxu0 1.0
        %791 = vmatprep.subr.mxu0 0.0
        %792 = vmatpush1.msra.mxu0 1.0
        %793 = vmatprep.subr.mxu0 0.0
        %794 = vmatpush1.msra.mxu0 1.0
        %795 = vmatprep.subr.mxu0 0.0
        %796 = vmatpush1.msra.mxu0 1.0
        %797 = vmatprep.subr.mxu0 0.0
        %798 = vmatpush1.msra.mxu0 1.0
        %799 = vmatprep.subr.mxu0 0.0
        %800 = vmatpush1.msra.mxu0 1.0
        %801 = vmatprep.subr.mxu0 0.0
        %802 = vmatpush1.msra.mxu0 1.0
        %803 = vmatprep.subr.mxu0 0.0
        %804 = vmatpush2.msra.mxu0 0.0
        %805 = vmatprep.subr.mxu0 0.0
        %806 = vmatpush2.msra.mxu0 0.0
        %807 = vmatprep.subr.mxu0 0.0
        %808 = vmatpush2.msra.mxu0 0.0
        %809 = vmatprep.subr.mxu0 0.0
        %810 = vmatpush2.msra.mxu0 0.0
        %811 = vmatprep.subr.mxu0 0.0
        %812 = vmatpush2.msra.mxu0 0.0
        %813 = vmatprep.subr.mxu0 0.0
        %814 = vmatpush2.msra.mxu0 0.0
        %815 = vmatprep.subr.mxu0 0.0
        %816 = vmatpush2.msra.mxu0 0.0
        %817 = vmatprep.subr.mxu0 0.0
        %818 = vmatpush2.msra.mxu0 0.0
        %819 = vmatprep.subr.mxu0 0.0
        %820 = vmatpush2.msra.mxu0 0.0
        %821 = vmatprep.subr.mxu0 0.0
        %822 = vmatpush2.msra.mxu0 0.0
        %823 = vmatprep.subr.mxu0 0.0
        %824 = vmatpush2.msra.mxu0 0.0
        %825 = vmatprep.subr.mxu0 0.0
        %826 = vmatpush2.msra.mxu0 0.0
        %827 = vmatprep.subr.mxu0 0.0
        %828 = vmatpush2.msra.mxu0 0.0
        %829 = vmatprep.subr.mxu0 0.0
        %830 = vmatpush2.msra.mxu0 0.0
        %831 = vmatprep.subr.mxu0 0.0
        %832 = vmatpush2.msra.mxu0 0.0
        %833 = vmatprep.subr.mxu0 0.0
        %834 = vmatpush2.msra.mxu0 0.0
        %835 = vmatprep.mubr.f32.mxu0 0.0
        %v836 = vand.u32 %v192, 4294901760
        %v837 = vsub.f32 %v192, %v836
        %v838 = vand.u32 %v837, 4294901760
        %839 = vmatmul.mubr.f32.gmra.mxu0 %v838
        %v840 = vpop.f32.mrf.mxu0
        %v841 = vadd.f32 %v663, %v840
        %v842 = vpop.f32.mrf.mxu0
        %843 = vmatprep.mubr.f32.mxu0 0.0
        %v844 = vand.u32 %v193, 4294901760
        %v845 = vsub.f32 %v193, %v844
        %v846 = vand.u32 %v845, 4294901760
        %847 = vmatmul.mubr.f32.gmra.mxu0 %v846
        %v848 = vpop.f32.mrf.mxu0
        %v849 = vadd.f32 %v670, %v848
        %v850 = vpop.f32.mrf.mxu0
        %851 = vmatprep.mubr.f32.mxu0 0.0
        %v852 = vand.u32 %v194, 4294901760
        %v853 = vsub.f32 %v194, %v852
        %v854 = vand.u32 %v853, 4294901760
        %855 = vmatmul.mubr.f32.gmra.mxu0 %v854
        %v856 = vpop.f32.mrf.mxu0
        %v857 = vadd.f32 %v677, %v856
        %v858 = vpop.f32.mrf.mxu0
        %859 = vmatprep.mubr.f32.mxu0 0.0
        %v860 = vand.u32 %v195, 4294901760
        %v861 = vsub.f32 %v195, %v860
        %v862 = vand.u32 %v861, 4294901760
        %863 = vmatmul.mubr.f32.gmra.mxu0 %v862
        %v864 = vpop.f32.mrf.mxu0
        %v865 = vadd.f32 %v684, %v864
        %v866 = vpop.f32.mrf.mxu0
        %867 = vmatprep.mubr.f32.mxu0 0.0
        %v868 = vand.u32 %v196, 4294901760
        %v869 = vsub.f32 %v196, %v868
        %v870 = vand.u32 %v869, 4294901760
        %871 = vmatmul.mubr.f32.gmra.mxu0 %v870
        %v872 = vpop.f32.mrf.mxu0
        %v873 = vadd.f32 %v691, %v872
        %v874 = vpop.f32.mrf.mxu0
        %875 = vmatprep.mubr.f32.mxu0 0.0
        %v876 = vand.u32 %v197, 4294901760
        %v877 = vsub.f32 %v197, %v876
        %v878 = vand.u32 %v877, 4294901760
        %879 = vmatmul.mubr.f32.gmra.mxu0 %v878
        %v880 = vpop.f32.mrf.mxu0
        %v881 = vadd.f32 %v698, %v880
        %v882 = vpop.f32.mrf.mxu0
        %883 = vmatprep.mubr.f32.mxu0 0.0
        %v884 = vand.u32 %v198, 4294901760
        %v885 = vsub.f32 %v198, %v884
        %v886 = vand.u32 %v885, 4294901760
        %887 = vmatmul.mubr.f32.gmra.mxu0 %v886
        %v888 = vpop.f32.mrf.mxu0
        %v889 = vadd.f32 %v705, %v888
        %v890 = vpop.f32.mrf.mxu0
        %891 = vmatprep.mubr.f32.mxu0 0.0
        %v892 = vand.u32 %v199, 4294901760
        %v893 = vsub.f32 %v199, %v892
        %v894 = vand.u32 %v893, 4294901760
        %895 = vmatmul.mubr.f32.gmra.mxu0 %v894
        %v896 = vpop.f32.mrf.mxu0
        %v897 = vadd.f32 %v712, %v896
        %v898 = vpop.f32.mrf.mxu0
        %899 = vmatprep.mubr.f32.mxu0 0.0
        %v900 = vand.u32 %v200, 4294901760
        %v901 = vsub.f32 %v200, %v900
        %v902 = vand.u32 %v901, 4294901760
        %903 = vmatmul.mubr.f32.gmra.mxu0 %v902
        %v904 = vpop.f32.mrf.mxu0
        %v905 = vadd.f32 %v719, %v904
        %v906 = vpop.f32.mrf.mxu0
        %907 = vmatprep.mubr.f32.mxu0 0.0
        %v908 = vand.u32 %v201, 4294901760
        %v909 = vsub.f32 %v201, %v908
        %v910 = vand.u32 %v909, 4294901760
        %911 = vmatmul.mubr.f32.gmra.mxu0 %v910
        %v912 = vpop.f32.mrf.mxu0
        %v913 = vadd.f32 %v726, %v912
        %v914 = vpop.f32.mrf.mxu0
        %915 = vmatprep.mubr.f32.mxu0 0.0
        %v916 = vand.u32 %v202, 4294901760
        %v917 = vsub.f32 %v202, %v916
        %v918 = vand.u32 %v917, 4294901760
        %919 = vmatmul.mubr.f32.gmra.mxu0 %v918
        %v920 = vpop.f32.mrf.mxu0
        %v921 = vadd.f32 %v733, %v920
        %v922 = vpop.f32.mrf.mxu0
        %923 = vmatprep.mubr.f32.mxu0 0.0
        %v924 = vand.u32 %v203, 4294901760
        %v925 = vsub.f32 %v203, %v924
        %v926 = vand.u32 %v925, 4294901760
        %927 = vmatmul.mubr.f32.gmra.mxu0 %v926
        %v928 = vpop.f32.mrf.mxu0
        %v929 = vadd.f32 %v740, %v928
        %v930 = vpop.f32.mrf.mxu0
        %931 = vmatprep.mubr.f32.mxu0 0.0
        %v932 = vand.u32 %v204, 4294901760
        %v933 = vsub.f32 %v204, %v932
        %v934 = vand.u32 %v933, 4294901760
        %935 = vmatmul.mubr.f32.gmra.mxu0 %v934
        %v936 = vpop.f32.mrf.mxu0
        %v937 = vadd.f32 %v747, %v936
        %v938 = vpop.f32.mrf.mxu0
        %939 = vmatprep.mubr.f32.mxu0 0.0
        %v940 = vand.u32 %v205, 4294901760
        %v941 = vsub.f32 %v205, %v940
        %v942 = vand.u32 %v941, 4294901760
        %943 = vmatmul.mubr.f32.gmra.mxu0 %v942
        %v944 = vpop.f32.mrf.mxu0
        %v945 = vadd.f32 %v754, %v944
        %v946 = vpop.f32.mrf.mxu0
        %947 = vmatprep.mubr.f32.mxu0 0.0
        %v948 = vand.u32 %v206, 4294901760
        %v949 = vsub.f32 %v206, %v948
        %v950 = vand.u32 %v949, 4294901760
        %951 = vmatmul.mubr.f32.gmra.mxu0 %v950
        %v952 = vpop.f32.mrf.mxu0
        %v953 = vadd.f32 %v761, %v952
        %v954 = vpop.f32.mrf.mxu0
        %955 = vmatprep.mubr.f32.mxu0 0.0
        %v956 = vand.u32 %v207, 4294901760
        %v957 = vsub.f32 %v207, %v956
        %v958 = vand.u32 %v957, 4294901760
        %959 = vmatmul.mubr.f32.gmra.mxu0 %v958
        %v960 = vpop.f32.mrf.mxu0
        %v961 = vadd.f32 %v768, %v960
        %v962 = vpop.f32.mrf.mxu0
        %963 = vdwg.mxu0
        %964 = vmatprep.subr.mxu0 0.0
        %965 = vmatpush1.msra.mxu0 0.0
        %966 = vmatprep.subr.mxu0 0.0
        %967 = vmatpush1.msra.mxu0 0.0
        %968 = vmatprep.subr.mxu0 0.0
        %969 = vmatpush1.msra.mxu0 0.0
        %970 = vmatprep.subr.mxu0 0.0
        %971 = vmatpush1.msra.mxu0 0.0
        %972 = vmatprep.subr.mxu0 0.0
        %973 = vmatpush1.msra.mxu0 0.0
        %974 = vmatprep.subr.mxu0 0.0
        %975 = vmatpush1.msra.mxu0 0.0
        %976 = vmatprep.subr.mxu0 0.0
        %977 = vmatpush1.msra.mxu0 0.0
        %978 = vmatprep.subr.mxu0 0.0
        %979 = vmatpush1.msra.mxu0 0.0
        %980 = vmatprep.subr.mxu0 0.0
        %981 = vmatpush1.msra.mxu0 0.0
        %982 = vmatprep.subr.mxu0 0.0
        %983 = vmatpush1.msra.mxu0 0.0
        %984 = vmatprep.subr.mxu0 0.0
        %985 = vmatpush1.msra.mxu0 0.0
        %986 = vmatprep.subr.mxu0 0.0
        %987 = vmatpush1.msra.mxu0 0.0
        %988 = vmatprep.subr.mxu0 0.0
        %989 = vmatpush1.msra.mxu0 0.0
        %990 = vmatprep.subr.mxu0 0.0
        %991 = vmatpush1.msra.mxu0 0.0
        %992 = vmatprep.subr.mxu0 0.0
        %993 = vmatpush1.msra.mxu0 0.0
        %994 = vmatprep.subr.mxu0 0.0
        %995 = vmatpush1.msra.mxu0 0.0
        %996 = vmatprep.subr.mxu0 0.0
        %997 = vmatpush2.msra.mxu0 0.0
        %998 = vmatprep.subr.mxu0 0.0
        %999 = vmatpush2.msra.mxu0 0.0
        %1000 = vmatprep.subr.mxu0 0.0
        %1001 = vmatpush2.msra.mxu0 0.0
        %1002 = vmatprep.subr.mxu0 0.0
        %1003 = vmatpush2.msra.mxu0 0.0
        %1004 = vmatprep.subr.mxu0 0.0
        %1005 = vmatpush2.msra.mxu0 0.0
        %1006 = vmatprep.subr.mxu0 0.0
        %1007 = vmatpush2.msra.mxu0 0.0
        %1008 = vmatprep.subr.mxu0 0.0
        %1009 = vmatpush2.msra.mxu0 0.0
        %1010 = vmatprep.subr.mxu0 0.0
        %1011 = vmatpush2.msra.mxu0 0.0
        %1012 = vmatprep.subr.mxu0 0.0
        %1013 = vmatpush2.msra.mxu0 0.0
        %1014 = vmatprep.subr.mxu0 0.0
        %1015 = vmatpush2.msra.mxu0 0.0
        %1016 = vmatprep.subr.mxu0 0.0
        %1017 = vmatpush2.msra.mxu0 0.0
        %1018 = vmatprep.subr.mxu0 0.0
        %1019 = vmatpush2.msra.mxu0 0.0
        %1020 = vmatprep.subr.mxu0 0.0
        %1021 = vmatpush2.msra.mxu0 0.0
        %1022 = vmatprep.subr.mxu0 0.0
        %1023 = vmatpush2.msra.mxu0 0.0
        %1024 = vmatprep.subr.mxu0 0.0
        %1025 = vmatpush2.msra.mxu0 0.0
        %1026 = vmatprep.subr.mxu0 0.0
        %1027 = vmatpush2.msra.mxu0 0.0
        %1028 = vmatprep.mubr.f32.mxu0 0.0
        %v1029 = vand.u32 %v192, 4294901760
        %1030 = vmatmul.mubr.f32.gmra.mxu0 %v1029
        %v1031 = vpop.f32.mrf.mxu0
        %v1032 = vadd.f32 %v841, %v1031
        %v1033 = vpop.f32.mrf.mxu0
        %1034 = vmatprep.mubr.f32.mxu0 0.0
        %v1035 = vand.u32 %v193, 4294901760
        %1036 = vmatmul.mubr.f32.gmra.mxu0 %v1035
        %v1037 = vpop.f32.mrf.mxu0
        %v1038 = vadd.f32 %v849, %v1037
        %v1039 = vpop.f32.mrf.mxu0
        %1040 = vmatprep.mubr.f32.mxu0 0.0
        %v1041 = vand.u32 %v194, 4294901760
        %1042 = vmatmul.mubr.f32.gmra.mxu0 %v1041
        %v1043 = vpop.f32.mrf.mxu0
        %v1044 = vadd.f32 %v857, %v1043
        %v1045 = vpop.f32.mrf.mxu0
        %1046 = vmatprep.mubr.f32.mxu0 0.0
        %v1047 = vand.u32 %v195, 4294901760
        %1048 = vmatmul.mubr.f32.gmra.mxu0 %v1047
        %v1049 = vpop.f32.mrf.mxu0
        %v1050 = vadd.f32 %v865, %v1049
        %v1051 = vpop.f32.mrf.mxu0
        %1052 = vmatprep.mubr.f32.mxu0 0.0
        %v1053 = vand.u32 %v196, 4294901760
        %1054 = vmatmul.mubr.f32.gmra.mxu0 %v1053
        %v1055 = vpop.f32.mrf.mxu0
        %v1056 = vadd.f32 %v873, %v1055
        %v1057 = vpop.f32.mrf.mxu0
        %1058 = vmatprep.mubr.f32.mxu0 0.0
        %v1059 = vand.u32 %v197, 4294901760
        %1060 = vmatmul.mubr.f32.gmra.mxu0 %v1059
        %v1061 = vpop.f32.mrf.mxu0
        %v1062 = vadd.f32 %v881, %v1061
        %v1063 = vpop.f32.mrf.mxu0
        %1064 = vmatprep.mubr.f32.mxu0 0.0
        %v1065 = vand.u32 %v198, 4294901760
        %1066 = vmatmul.mubr.f32.gmra.mxu0 %v1065
        %v1067 = vpop.f32.mrf.mxu0
        %v1068 = vadd.f32 %v889, %v1067
        %v1069 = vpop.f32.mrf.mxu0
        %1070 = vmatprep.mubr.f32.mxu0 0.0
        %v1071 = vand.u32 %v199, 4294901760
        %1072 = vmatmul.mubr.f32.gmra.mxu0 %v1071
        %v1073 = vpop.f32.mrf.mxu0
        %v1074 = vadd.f32 %v897, %v1073
        %v1075 = vpop.f32.mrf.mxu0
        %1076 = vmatprep.mubr.f32.mxu0 0.0
        %v1077 = vand.u32 %v200, 4294901760
        %1078 = vmatmul.mubr.f32.gmra.mxu0 %v1077
        %v1079 = vpop.f32.mrf.mxu0
        %v1080 = vadd.f32 %v905, %v1079
        %v1081 = vpop.f32.mrf.mxu0
        %1082 = vmatprep.mubr.f32.mxu0 0.0
        %v1083 = vand.u32 %v201, 4294901760
        %1084 = vmatmul.mubr.f32.gmra.mxu0 %v1083
        %v1085 = vpop.f32.mrf.mxu0
        %v1086 = vadd.f32 %v913, %v1085
        %v1087 = vpop.f32.mrf.mxu0
        %1088 = vmatprep.mubr.f32.mxu0 0.0
        %v1089 = vand.u32 %v202, 4294901760
        %1090 = vmatmul.mubr.f32.gmra.mxu0 %v1089
        %v1091 = vpop.f32.mrf.mxu0
        %v1092 = vadd.f32 %v921, %v1091
        %v1093 = vpop.f32.mrf.mxu0
        %1094 = vmatprep.mubr.f32.mxu0 0.0
        %v1095 = vand.u32 %v203, 4294901760
        %1096 = vmatmul.mubr.f32.gmra.mxu0 %v1095
        %v1097 = vpop.f32.mrf.mxu0
        %v1098 = vadd.f32 %v929, %v1097
        %v1099 = vpop.f32.mrf.mxu0
        %1100 = vmatprep.mubr.f32.mxu0 0.0
        %v1101 = vand.u32 %v204, 4294901760
        %1102 = vmatmul.mubr.f32.gmra.mxu0 %v1101
        %v1103 = vpop.f32.mrf.mxu0
        %v1104 = vadd.f32 %v937, %v1103
        %v1105 = vpop.f32.mrf.mxu0
        %1106 = vmatprep.mubr.f32.mxu0 0.0
        %v1107 = vand.u32 %v205, 4294901760
        %1108 = vmatmul.mubr.f32.gmra.mxu0 %v1107
        %v1109 = vpop.f32.mrf.mxu0
        %v1110 = vadd.f32 %v945, %v1109
        %v1111 = vpop.f32.mrf.mxu0
        %1112 = vmatprep.mubr.f32.mxu0 0.0
        %v1113 = vand.u32 %v206, 4294901760
        %1114 = vmatmul.mubr.f32.gmra.mxu0 %v1113
        %v1115 = vpop.f32.mrf.mxu0
        %v1116 = vadd.f32 %v953, %v1115
        %v1117 = vpop.f32.mrf.mxu0
        %1118 = vmatprep.mubr.f32.mxu0 0.0
        %v1119 = vand.u32 %v207, 4294901760
        %1120 = vmatmul.mubr.f32.gmra.mxu0 %v1119
        %v1121 = vpop.f32.mrf.mxu0
        %v1122 = vadd.f32 %v961, %v1121
        %v1123 = vpop.f32.mrf.mxu0
        %1124 = vdwg.mxu0
        %1125 = vmatprep.subr.mxu0 0.0
        %1126 = vmatpush1.msra.mxu0 1.0
        %1127 = vmatprep.subr.mxu0 0.0
        %1128 = vmatpush1.msra.mxu0 1.0
        %1129 = vmatprep.subr.mxu0 0.0
        %1130 = vmatpush1.msra.mxu0 1.0
        %1131 = vmatprep.subr.mxu0 0.0
        %1132 = vmatpush1.msra.mxu0 1.0
        %1133 = vmatprep.subr.mxu0 0.0
        %1134 = vmatpush1.msra.mxu0 1.0
        %1135 = vmatprep.subr.mxu0 0.0
        %1136 = vmatpush1.msra.mxu0 1.0
        %1137 = vmatprep.subr.mxu0 0.0
        %1138 = vmatpush1.msra.mxu0 1.0
        %1139 = vmatprep.subr.mxu0 0.0
        %1140 = vmatpush1.msra.mxu0 1.0
        %1141 = vmatprep.subr.mxu0 0.0
        %1142 = vmatpush1.msra.mxu0 1.0
        %1143 = vmatprep.subr.mxu0 0.0
        %1144 = vmatpush1.msra.mxu0 1.0
        %1145 = vmatprep.subr.mxu0 0.0
        %1146 = vmatpush1.msra.mxu0 1.0
        %1147 = vmatprep.subr.mxu0 0.0
        %1148 = vmatpush1.msra.mxu0 1.0
        %1149 = vmatprep.subr.mxu0 0.0
        %1150 = vmatpush1.msra.mxu0 1.0
        %1151 = vmatprep.subr.mxu0 0.0
        %1152 = vmatpush1.msra.mxu0 1.0
        %1153 = vmatprep.subr.mxu0 0.0
        %1154 = vmatpush1.msra.mxu0 1.0
        %1155 = vmatprep.subr.mxu0 0.0
        %1156 = vmatpush1.msra.mxu0 1.0
        %1157 = vmatprep.subr.mxu0 0.0
        %1158 = vmatpush2.msra.mxu0 0.0
        %1159 = vmatprep.subr.mxu0 0.0
        %1160 = vmatpush2.msra.mxu0 0.0
        %1161 = vmatprep.subr.mxu0 0.0
        %1162 = vmatpush2.msra.mxu0 0.0
        %1163 = vmatprep.subr.mxu0 0.0
        %1164 = vmatpush2.msra.mxu0 0.0
        %1165 = vmatprep.subr.mxu0 0.0
        %1166 = vmatpush2.msra.mxu0 0.0
        %1167 = vmatprep.subr.mxu0 0.0
        %1168 = vmatpush2.msra.mxu0 0.0
        %1169 = vmatprep.subr.mxu0 0.0
        %1170 = vmatpush2.msra.mxu0 0.0
        %1171 = vmatprep.subr.mxu0 0.0
        %1172 = vmatpush2.msra.mxu0 0.0
        %1173 = vmatprep.subr.mxu0 0.0
        %1174 = vmatpush2.msra.mxu0 0.0
        %1175 = vmatprep.subr.mxu0 0.0
        %1176 = vmatpush2.msra.mxu0 0.0
        %1177 = vmatprep.subr.mxu0 0.0
        %1178 = vmatpush2.msra.mxu0 0.0
        %1179 = vmatprep.subr.mxu0 0.0
        %1180 = vmatpush2.msra.mxu0 0.0
        %1181 = vmatprep.subr.mxu0 0.0
        %1182 = vmatpush2.msra.mxu0 0.0
        %1183 = vmatprep.subr.mxu0 0.0
        %1184 = vmatpush2.msra.mxu0 0.0
        %1185 = vmatprep.subr.mxu0 0.0
        %1186 = vmatpush2.msra.mxu0 0.0
        %1187 = vmatprep.subr.mxu0 0.0
        %1188 = vmatpush2.msra.mxu0 0.0
        %1189 = vmatprep.mubr.f32.mxu0 0.0
        %v1190 = vand.u32 %v192, 4294901760
        %1191 = vmatmul.mubr.f32.gmra.mxu0 %v1190
        %v1192 = vpop.f32.mrf.mxu0
        %v1193 = vadd.f32 %v1032, %v1192
        %v1194 = vpop.f32.mrf.mxu0
        %1195 = vmatprep.mubr.f32.mxu0 0.0
        %v1196 = vand.u32 %v193, 4294901760
        %1197 = vmatmul.mubr.f32.gmra.mxu0 %v1196
        %v1198 = vpop.f32.mrf.mxu0
        %v1199 = vadd.f32 %v1038, %v1198
        %v1200 = vpop.f32.mrf.mxu0
        %1201 = vmatprep.mubr.f32.mxu0 0.0
        %v1202 = vand.u32 %v194, 4294901760
        %1203 = vmatmul.mubr.f32.gmra.mxu0 %v1202
        %v1204 = vpop.f32.mrf.mxu0
        %v1205 = vadd.f32 %v1044, %v1204
        %v1206 = vpop.f32.mrf.mxu0
        %1207 = vmatprep.mubr.f32.mxu0 0.0
        %v1208 = vand.u32 %v195, 4294901760
        %1209 = vmatmul.mubr.f32.gmra.mxu0 %v1208
        %v1210 = vpop.f32.mrf.mxu0
        %v1211 = vadd.f32 %v1050, %v1210
        %v1212 = vpop.f32.mrf.mxu0
        %1213 = vmatprep.mubr.f32.mxu0 0.0
        %v1214 = vand.u32 %v196, 4294901760
        %1215 = vmatmul.mubr.f32.gmra.mxu0 %v1214
        %v1216 = vpop.f32.mrf.mxu0
        %v1217 = vadd.f32 %v1056, %v1216
        %v1218 = vpop.f32.mrf.mxu0
        %1219 = vmatprep.mubr.f32.mxu0 0.0
        %v1220 = vand.u32 %v197, 4294901760
        %1221 = vmatmul.mubr.f32.gmra.mxu0 %v1220
        %v1222 = vpop.f32.mrf.mxu0
        %v1223 = vadd.f32 %v1062, %v1222
        %v1224 = vpop.f32.mrf.mxu0
        %1225 = vmatprep.mubr.f32.mxu0 0.0
        %v1226 = vand.u32 %v198, 4294901760
        %1227 = vmatmul.mubr.f32.gmra.mxu0 %v1226
        %v1228 = vpop.f32.mrf.mxu0
        %v1229 = vadd.f32 %v1068, %v1228
        %v1230 = vpop.f32.mrf.mxu0
        %1231 = vmatprep.mubr.f32.mxu0 0.0
        %v1232 = vand.u32 %v199, 4294901760
        %1233 = vmatmul.mubr.f32.gmra.mxu0 %v1232
        %v1234 = vpop.f32.mrf.mxu0
        %v1235 = vadd.f32 %v1074, %v1234
        %v1236 = vpop.f32.mrf.mxu0
        %1237 = vmatprep.mubr.f32.mxu0 0.0
        %v1238 = vand.u32 %v200, 4294901760
        %1239 = vmatmul.mubr.f32.gmra.mxu0 %v1238
        %v1240 = vpop.f32.mrf.mxu0
        %v1241 = vadd.f32 %v1080, %v1240
        %v1242 = vpop.f32.mrf.mxu0
        %1243 = vmatprep.mubr.f32.mxu0 0.0
        %v1244 = vand.u32 %v201, 4294901760
        %1245 = vmatmul.mubr.f32.gmra.mxu0 %v1244
        %v1246 = vpop.f32.mrf.mxu0
        %v1247 = vadd.f32 %v1086, %v1246
        %v1248 = vpop.f32.mrf.mxu0
        %1249 = vmatprep.mubr.f32.mxu0 0.0
        %v1250 = vand.u32 %v202, 4294901760
        %1251 = vmatmul.mubr.f32.gmra.mxu0 %v1250
        %v1252 = vpop.f32.mrf.mxu0
        %v1253 = vadd.f32 %v1092, %v1252
        %v1254 = vpop.f32.mrf.mxu0
        %1255 = vmatprep.mubr.f32.mxu0 0.0
        %v1256 = vand.u32 %v203, 4294901760
        %1257 = vmatmul.mubr.f32.gmra.mxu0 %v1256
        %v1258 = vpop.f32.mrf.mxu0
        %v1259 = vadd.f32 %v1098, %v1258
        %v1260 = vpop.f32.mrf.mxu0
        %1261 = vmatprep.mubr.f32.mxu0 0.0
        %v1262 = vand.u32 %v204, 4294901760
        %1263 = vmatmul.mubr.f32.gmra.mxu0 %v1262
        %v1264 = vpop.f32.mrf.mxu0
        %v1265 = vadd.f32 %v1104, %v1264
        %v1266 = vpop.f32.mrf.mxu0
        %1267 = vmatprep.mubr.f32.mxu0 0.0
        %v1268 = vand.u32 %v205, 4294901760
        %1269 = vmatmul.mubr.f32.gmra.mxu0 %v1268
        %v1270 = vpop.f32.mrf.mxu0
        %v1271 = vadd.f32 %v1110, %v1270
        %v1272 = vpop.f32.mrf.mxu0
        %1273 = vmatprep.mubr.f32.mxu0 0.0
        %v1274 = vand.u32 %v206, 4294901760
        %1275 = vmatmul.mubr.f32.gmra.mxu0 %v1274
        %v1276 = vpop.f32.mrf.mxu0
        %v1277 = vadd.f32 %v1116, %v1276
        %v1278 = vpop.f32.mrf.mxu0
        %1279 = vmatprep.mubr.f32.mxu0 0.0
        %v1280 = vand.u32 %v207, 4294901760
        %1281 = vmatmul.mubr.f32.gmra.mxu0 %v1280
        %v1282 = vpop.f32.mrf.mxu0
        %v1283 = vadd.f32 %v1122, %v1282
        %v1284 = vpop.f32.mrf.mxu0
        %1285 = vdwg.mxu0
        %v1286 = vld [vmem:[%s1] sm:$0xff]
        %v1287 = vld [vmem:[%s1 + $0x8] sm:$0xff]
        %v1288 = vld [vmem:[%s1 + $0x10] sm:$0xff]
        %v1289 = vld [vmem:[%s1 + $0x18] sm:$0xff]
        %v1290 = vld [vmem:[%s1 + $0x20] sm:$0xff]
        %v1291 = vld [vmem:[%s1 + $0x28] sm:$0xff]
        %v1292 = vld [vmem:[%s1 + $0x30] sm:$0xff]
        %v1293 = vld [vmem:[%s1 + $0x38] sm:$0xff]
        %1310 = vset.pattern.permute.xlu0 0
        %1311 = vperm.xlu0 %1310, %v1193
        %v1312 = vpop.permute.xlu0 %1311
        %1313 = vset.pattern.permute.xlu0 0
        %1314 = vperm.xlu0 %1313, %v1199
        %v1315 = vpop.permute.xlu0 %1314
        %1316 = vset.pattern.permute.xlu0 0
        %1317 = vperm.xlu0 %1316, %v1205
        %v1318 = vpop.permute.xlu0 %1317
        %1319 = vset.pattern.permute.xlu0 0
        %1320 = vperm.xlu0 %1319, %v1211
        %v1321 = vpop.permute.xlu0 %1320
        %1322 = vset.pattern.permute.xlu0 0
        %1323 = vperm.xlu0 %1322, %v1217
        %v1324 = vpop.permute.xlu0 %1323
        %1325 = vset.pattern.permute.xlu0 0
        %1326 = vperm.xlu0 %1325, %v1223
        %v1327 = vpop.permute.xlu0 %1326
        %1328 = vset.pattern.permute.xlu0 0
        %1329 = vperm.xlu0 %1328, %v1229
        %v1330 = vpop.permute.xlu0 %1329
        %1331 = vset.pattern.permute.xlu0 0
        %1332 = vperm.xlu0 %1331, %v1235
        %v1333 = vpop.permute.xlu0 %1332
        %1334 = vset.pattern.permute.xlu0 0
        %1335 = vperm.xlu0 %1334, %v1241
        %v1336 = vpop.permute.xlu0 %1335
        %1337 = vset.pattern.permute.xlu0 0
        %1338 = vperm.xlu0 %1337, %v1247
        %v1339 = vpop.permute.xlu0 %1338
        %1340 = vset.pattern.permute.xlu0 0
        %1341 = vperm.xlu0 %1340, %v1253
        %v1342 = vpop.permute.xlu0 %1341
        %1343 = vset.pattern.permute.xlu0 0
        %1344 = vperm.xlu0 %1343, %v1259
        %v1345 = vpop.permute.xlu0 %1344
        %1346 = vset.pattern.permute.xlu0 0
        %1347 = vperm.xlu0 %1346, %v1265
        %v1348 = vpop.permute.xlu0 %1347
        %1349 = vset.pattern.permute.xlu0 0
        %1350 = vperm.xlu0 %1349, %v1271
        %v1351 = vpop.permute.xlu0 %1350
        %1352 = vset.pattern.permute.xlu0 0
        %1353 = vperm.xlu0 %1352, %v1277
        %v1354 = vpop.permute.xlu0 %1353
        %1355 = vset.pattern.permute.xlu0 0
        %1356 = vperm.xlu0 %1355, %v1283
        %v1357 = vpop.permute.xlu0 %1356
        %v1358 = vlaneseq
        %v1359 = vand.u32 %v1358, 127
        %v1360 = vlaneseq
        %v1361 = vshrl.u32 %v1360, 7
        %v1362 = vsub.s32 %v1359, %v1361
        %v1363 = vrot.slane %v1312, %v1362
        %v1364 = vadd.s32 %v1359, 4294967288
        %v1365 = vlaneseq
        %v1366 = vshrl.u32 %v1365, 7
        %v1367 = vsub.s32 %v1364, %v1366
        %v1368 = vrot.slane %v1315, %v1367
        %vm1369 = vcmask 130112
        %v1370 = vsel %vm1369, %v1368, %v1363
        %v1371 = vadd.s32 %v1359, 4294967280
        %v1372 = vlaneseq
        %v1373 = vshrl.u32 %v1372, 7
        %v1374 = vsub.s32 %v1371, %v1373
        %v1375 = vrot.slane %v1318, %v1374
        %vm1376 = vcmask 195712
        %v1377 = vsel %vm1376, %v1375, %v1370
        %v1378 = vadd.s32 %v1359, 4294967272
        %v1379 = vlaneseq
        %v1380 = vshrl.u32 %v1379, 7
        %v1381 = vsub.s32 %v1378, %v1380
        %v1382 = vrot.slane %v1321, %v1381
        %vm1383 = vcmask 261312
        %v1384 = vsel %vm1383, %v1382, %v1377
        %v1385 = vadd.s32 %v1359, 4294967264
        %v1386 = vlaneseq
        %v1387 = vshrl.u32 %v1386, 7
        %v1388 = vsub.s32 %v1385, %v1387
        %v1389 = vrot.slane %v1324, %v1388
        %vm1390 = vcmask 326912
        %v1391 = vsel %vm1390, %v1389, %v1384
        %v1392 = vadd.s32 %v1359, 4294967256
        %v1393 = vlaneseq
        %v1394 = vshrl.u32 %v1393, 7
        %v1395 = vsub.s32 %v1392, %v1394
        %v1396 = vrot.slane %v1327, %v1395
        %vm1397 = vcmask 392512
        %v1398 = vsel %vm1397, %v1396, %v1391
        %v1399 = vadd.s32 %v1359, 4294967248
        %v1400 = vlaneseq
        %v1401 = vshrl.u32 %v1400, 7
        %v1402 = vsub.s32 %v1399, %v1401
        %v1403 = vrot.slane %v1330, %v1402
        %vm1404 = vcmask 458112
        %v1405 = vsel %vm1404, %v1403, %v1398
        %v1406 = vadd.s32 %v1359, 4294967240
        %v1407 = vlaneseq
        %v1408 = vshrl.u32 %v1407, 7
        %v1409 = vsub.s32 %v1406, %v1408
        %v1410 = vrot.slane %v1333, %v1409
        %vm1411 = vcmask 523712
        %v1412 = vsel %vm1411, %v1410, %v1405
        %v1413 = vlaneseq
        %v1414 = vshrl.u32 %v1413, 7
        %v1415 = vsub.s32 %v1359, %v1414
        %v1416 = vrot.slane %v1336, %v1415
        %v1417 = vlaneseq
        %v1418 = vshrl.u32 %v1417, 7
        %v1419 = vsub.s32 %v1364, %v1418
        %v1420 = vrot.slane %v1339, %v1419
        %v1421 = vsel %vm1369, %v1420, %v1416
        %v1422 = vlaneseq
        %v1423 = vshrl.u32 %v1422, 7
        %v1424 = vsub.s32 %v1371, %v1423
        %v1425 = vrot.slane %v1342, %v1424
        %v1426 = vsel %vm1376, %v1425, %v1421
        %v1427 = vlaneseq
        %v1428 = vshrl.u32 %v1427, 7
        %v1429 = vsub.s32 %v1378, %v1428
        %v1430 = vrot.slane %v1345, %v1429
        %v1431 = vsel %vm1383, %v1430, %v1426
        %v1432 = vlaneseq
        %v1433 = vshrl.u32 %v1432, 7
        %v1434 = vsub.s32 %v1385, %v1433
        %v1435 = vrot.slane %v1348, %v1434
        %v1436 = vsel %vm1390, %v1435, %v1431
        %v1437 = vlaneseq
        %v1438 = vshrl.u32 %v1437, 7
        %v1439 = vsub.s32 %v1392, %v1438
        %v1440 = vrot.slane %v1351, %v1439
        %v1441 = vsel %vm1397, %v1440, %v1436
        %v1442 = vlaneseq
        %v1443 = vshrl.u32 %v1442, 7
        %v1444 = vsub.s32 %v1399, %v1443
        %v1445 = vrot.slane %v1354, %v1444
        %v1446 = vsel %vm1404, %v1445, %v1441
        %v1447 = vlaneseq
        %v1448 = vshrl.u32 %v1447, 7
        %v1449 = vsub.s32 %v1406, %v1448
        %v1450 = vrot.slane %v1357, %v1449
        %v1451 = vsel %vm1411, %v1450, %v1446
        %vm1452 = vcmask 1041409
        %v1453 = vsel %vm1452, %v1451, %v1412
        %vm1454 = vcmask 523264
        %v1455 = vsel %vm1454, %v1453, 0
        %1457 = vmatprep.subr.mxu0 0.0
        %1458 = vmatpush1.msra.mxu0 0.0
        %1459 = vmatprep.subr.mxu0 0.0
        %1460 = vmatpush1.msra.mxu0 0.0
        %1461 = vmatprep.subr.mxu0 0.0
        %1462 = vmatpush1.msra.mxu0 0.0
        %1463 = vmatprep.subr.mxu0 0.0
        %1464 = vmatpush1.msra.mxu0 0.0
        %1465 = vmatprep.subr.mxu0 0.0
        %1466 = vmatpush1.msra.mxu0 0.0
        %1467 = vmatprep.subr.mxu0 0.0
        %1468 = vmatpush1.msra.mxu0 0.0
        %1469 = vmatprep.subr.mxu0 0.0
        %1470 = vmatpush1.msra.mxu0 0.0
        %1471 = vmatprep.subr.mxu0 0.0
        %1472 = vmatpush1.msra.mxu0 0.0
        %1473 = vmatprep.subr.mxu0 0.0
        %v1474 = vand.u32 %v1293, 4294901760
        %1475 = vmatpush1.msra.mxu0 %v1474
        %1476 = vmatprep.subr.mxu0 0.0
        %v1477 = vand.u32 %v1292, 4294901760
        %1478 = vmatpush1.msra.mxu0 %v1477
        %1479 = vmatprep.subr.mxu0 0.0
        %v1480 = vand.u32 %v1291, 4294901760
        %1481 = vmatpush1.msra.mxu0 %v1480
        %1482 = vmatprep.subr.mxu0 0.0
        %v1483 = vand.u32 %v1290, 4294901760
        %1484 = vmatpush1.msra.mxu0 %v1483
        %1485 = vmatprep.subr.mxu0 0.0
        %v1486 = vand.u32 %v1289, 4294901760
        %1487 = vmatpush1.msra.mxu0 %v1486
        %1488 = vmatprep.subr.mxu0 0.0
        %v1489 = vand.u32 %v1288, 4294901760
        %1490 = vmatpush1.msra.mxu0 %v1489
        %1491 = vmatprep.subr.mxu0 0.0
        %v1492 = vand.u32 %v1287, 4294901760
        %1493 = vmatpush1.msra.mxu0 %v1492
        %1494 = vmatprep.subr.mxu0 0.0
        %v1495 = vand.u32 %v1286, 4294901760
        %1496 = vmatpush1.msra.mxu0 %v1495
        %1497 = vmatprep.subr.mxu0 0.0
        %1498 = vmatpush2.msra.mxu0 0.0
        %1499 = vmatprep.subr.mxu0 0.0
        %1500 = vmatpush2.msra.mxu0 0.0
        %1501 = vmatprep.subr.mxu0 0.0
        %1502 = vmatpush2.msra.mxu0 0.0
        %1503 = vmatprep.subr.mxu0 0.0
        %1504 = vmatpush2.msra.mxu0 0.0
        %1505 = vmatprep.subr.mxu0 0.0
        %1506 = vmatpush2.msra.mxu0 0.0
        %1507 = vmatprep.subr.mxu0 0.0
        %1508 = vmatpush2.msra.mxu0 0.0
        %1509 = vmatprep.subr.mxu0 0.0
        %1510 = vmatpush2.msra.mxu0 0.0
        %1511 = vmatprep.subr.mxu0 0.0
        %1512 = vmatpush2.msra.mxu0 0.0
        %1513 = vmatprep.subr.mxu0 0.0
        %1514 = vmatpush2.msra.mxu0 0.0
        %1515 = vmatprep.subr.mxu0 0.0
        %1516 = vmatpush2.msra.mxu0 0.0
        %1517 = vmatprep.subr.mxu0 0.0
        %1518 = vmatpush2.msra.mxu0 0.0
        %1519 = vmatprep.subr.mxu0 0.0
        %1520 = vmatpush2.msra.mxu0 0.0
        %1521 = vmatprep.subr.mxu0 0.0
        %1522 = vmatpush2.msra.mxu0 0.0
        %1523 = vmatprep.subr.mxu0 0.0
        %1524 = vmatpush2.msra.mxu0 0.0
        %1525 = vmatprep.subr.mxu0 0.0
        %1526 = vmatpush2.msra.mxu0 0.0
        %1527 = vmatprep.subr.mxu0 0.0
        %1528 = vmatpush2.msra.mxu0 0.0
        %1529 = vmatprep.mubr.f32.mxu0 0.0
        %v1530 = vand.u32 %v1455, 4294901760
        %v1531 = vsub.f32 %v1455, %v1530
        %v1532 = vand.u32 %v1531, 4294901760
        %v1533 = vsub.f32 %v1531, %v1532
        %v1534 = vand.u32 %v1533, 4294901760
        %1535 = vmatmul.mubr.f32.gmra.mxu0 %v1534
        %v1536 = vpop.f32.mrf.mxu0
        %v1537 = vadd.f32 0.0, %v1536
        %v1538 = vpop.f32.mrf.mxu0
        %1539 = vdwg.mxu0
        %1540 = vmatprep.subr.mxu0 0.0
        %1541 = vmatpush1.msra.mxu0 0.0
        %1542 = vmatprep.subr.mxu0 0.0
        %1543 = vmatpush1.msra.mxu0 0.0
        %1544 = vmatprep.subr.mxu0 0.0
        %1545 = vmatpush1.msra.mxu0 0.0
        %1546 = vmatprep.subr.mxu0 0.0
        %1547 = vmatpush1.msra.mxu0 0.0
        %1548 = vmatprep.subr.mxu0 0.0
        %1549 = vmatpush1.msra.mxu0 0.0
        %1550 = vmatprep.subr.mxu0 0.0
        %1551 = vmatpush1.msra.mxu0 0.0
        %1552 = vmatprep.subr.mxu0 0.0
        %1553 = vmatpush1.msra.mxu0 0.0
        %1554 = vmatprep.subr.mxu0 0.0
        %1555 = vmatpush1.msra.mxu0 0.0
        %1556 = vmatprep.subr.mxu0 0.0
        %v1557 = vand.u32 %v1293, 4294901760
        %v1558 = vsub.f32 %v1293, %v1557
        %v1559 = vand.u32 %v1558, 4294901760
        %v1560 = vsub.f32 %v1558, %v1559
        %v1561 = vand.u32 %v1560, 4294901760
        %1562 = vmatpush1.msra.mxu0 %v1561
        %1563 = vmatprep.subr.mxu0 0.0
        %v1564 = vand.u32 %v1292, 4294901760
        %v1565 = vsub.f32 %v1292, %v1564
        %v1566 = vand.u32 %v1565, 4294901760
        %v1567 = vsub.f32 %v1565, %v1566
        %v1568 = vand.u32 %v1567, 4294901760
        %1569 = vmatpush1.msra.mxu0 %v1568
        %1570 = vmatprep.subr.mxu0 0.0
        %v1571 = vand.u32 %v1291, 4294901760
        %v1572 = vsub.f32 %v1291, %v1571
        %v1573 = vand.u32 %v1572, 4294901760
        %v1574 = vsub.f32 %v1572, %v1573
        %v1575 = vand.u32 %v1574, 4294901760
        %1576 = vmatpush1.msra.mxu0 %v1575
        %1577 = vmatprep.subr.mxu0 0.0
        %v1578 = vand.u32 %v1290, 4294901760
        %v1579 = vsub.f32 %v1290, %v1578
        %v1580 = vand.u32 %v1579, 4294901760
        %v1581 = vsub.f32 %v1579, %v1580
        %v1582 = vand.u32 %v1581, 4294901760
        %1583 = vmatpush1.msra.mxu0 %v1582
        %1584 = vmatprep.subr.mxu0 0.0
        %v1585 = vand.u32 %v1289, 4294901760
        %v1586 = vsub.f32 %v1289, %v1585
        %v1587 = vand.u32 %v1586, 4294901760
        %v1588 = vsub.f32 %v1586, %v1587
        %v1589 = vand.u32 %v1588, 4294901760
        %1590 = vmatpush1.msra.mxu0 %v1589
        %1591 = vmatprep.subr.mxu0 0.0
        %v1592 = vand.u32 %v1288, 4294901760
        %v1593 = vsub.f32 %v1288, %v1592
        %v1594 = vand.u32 %v1593, 4294901760
        %v1595 = vsub.f32 %v1593, %v1594
        %v1596 = vand.u32 %v1595, 4294901760
        %1597 = vmatpush1.msra.mxu0 %v1596
        %1598 = vmatprep.subr.mxu0 0.0
        %v1599 = vand.u32 %v1287, 4294901760
        %v1600 = vsub.f32 %v1287, %v1599
        %v1601 = vand.u32 %v1600, 4294901760
        %v1602 = vsub.f32 %v1600, %v1601
        %v1603 = vand.u32 %v1602, 4294901760
        %1604 = vmatpush1.msra.mxu0 %v1603
        %1605 = vmatprep.subr.mxu0 0.0
        %v1606 = vand.u32 %v1286, 4294901760
        %v1607 = vsub.f32 %v1286, %v1606
        %v1608 = vand.u32 %v1607, 4294901760
        %v1609 = vsub.f32 %v1607, %v1608
        %v1610 = vand.u32 %v1609, 4294901760
        %1611 = vmatpush1.msra.mxu0 %v1610
        %1612 = vmatprep.subr.mxu0 0.0
        %1613 = vmatpush2.msra.mxu0 0.0
        %1614 = vmatprep.subr.mxu0 0.0
        %1615 = vmatpush2.msra.mxu0 0.0
        %1616 = vmatprep.subr.mxu0 0.0
        %1617 = vmatpush2.msra.mxu0 0.0
        %1618 = vmatprep.subr.mxu0 0.0
        %1619 = vmatpush2.msra.mxu0 0.0
        %1620 = vmatprep.subr.mxu0 0.0
        %1621 = vmatpush2.msra.mxu0 0.0
        %1622 = vmatprep.subr.mxu0 0.0
        %1623 = vmatpush2.msra.mxu0 0.0
        %1624 = vmatprep.subr.mxu0 0.0
        %1625 = vmatpush2.msra.mxu0 0.0
        %1626 = vmatprep.subr.mxu0 0.0
        %1627 = vmatpush2.msra.mxu0 0.0
        %1628 = vmatprep.subr.mxu0 0.0
        %1629 = vmatpush2.msra.mxu0 0.0
        %1630 = vmatprep.subr.mxu0 0.0
        %1631 = vmatpush2.msra.mxu0 0.0
        %1632 = vmatprep.subr.mxu0 0.0
        %1633 = vmatpush2.msra.mxu0 0.0
        %1634 = vmatprep.subr.mxu0 0.0
        %1635 = vmatpush2.msra.mxu0 0.0
        %1636 = vmatprep.subr.mxu0 0.0
        %1637 = vmatpush2.msra.mxu0 0.0
        %1638 = vmatprep.subr.mxu0 0.0
        %1639 = vmatpush2.msra.mxu0 0.0
        %1640 = vmatprep.subr.mxu0 0.0
        %1641 = vmatpush2.msra.mxu0 0.0
        %1642 = vmatprep.subr.mxu0 0.0
        %1643 = vmatpush2.msra.mxu0 0.0
        %1644 = vmatprep.mubr.f32.mxu0 0.0
        %v1645 = vand.u32 %v1455, 4294901760
        %1646 = vmatmul.mubr.f32.gmra.mxu0 %v1645
        %v1647 = vpop.f32.mrf.mxu0
        %v1648 = vadd.f32 %v1537, %v1647
        %v1649 = vpop.f32.mrf.mxu0
        %1650 = vdwg.mxu0
        %1651 = vmatprep.subr.mxu0 0.0
        %1652 = vmatpush1.msra.mxu0 0.0
        %1653 = vmatprep.subr.mxu0 0.0
        %1654 = vmatpush1.msra.mxu0 0.0
        %1655 = vmatprep.subr.mxu0 0.0
        %1656 = vmatpush1.msra.mxu0 0.0
        %1657 = vmatprep.subr.mxu0 0.0
        %1658 = vmatpush1.msra.mxu0 0.0
        %1659 = vmatprep.subr.mxu0 0.0
        %1660 = vmatpush1.msra.mxu0 0.0
        %1661 = vmatprep.subr.mxu0 0.0
        %1662 = vmatpush1.msra.mxu0 0.0
        %1663 = vmatprep.subr.mxu0 0.0
        %1664 = vmatpush1.msra.mxu0 0.0
        %1665 = vmatprep.subr.mxu0 0.0
        %1666 = vmatpush1.msra.mxu0 0.0
        %1667 = vmatprep.subr.mxu0 0.0
        %v1668 = vand.u32 %v1293, 4294901760
        %v1669 = vsub.f32 %v1293, %v1668
        %1670 = vmatpush1.msra.mxu0 %v1669
        %1671 = vmatprep.subr.mxu0 0.0
        %v1672 = vand.u32 %v1292, 4294901760
        %v1673 = vsub.f32 %v1292, %v1672
        %1674 = vmatpush1.msra.mxu0 %v1673
        %1675 = vmatprep.subr.mxu0 0.0
        %v1676 = vand.u32 %v1291, 4294901760
        %v1677 = vsub.f32 %v1291, %v1676
        %1678 = vmatpush1.msra.mxu0 %v1677
        %1679 = vmatprep.subr.mxu0 0.0
        %v1680 = vand.u32 %v1290, 4294901760
        %v1681 = vsub.f32 %v1290, %v1680
        %1682 = vmatpush1.msra.mxu0 %v1681
        %1683 = vmatprep.subr.mxu0 0.0
        %v1684 = vand.u32 %v1289, 4294901760
        %v1685 = vsub.f32 %v1289, %v1684
        %1686 = vmatpush1.msra.mxu0 %v1685
        %1687 = vmatprep.subr.mxu0 0.0
        %v1688 = vand.u32 %v1288, 4294901760
        %v1689 = vsub.f32 %v1288, %v1688
        %1690 = vmatpush1.msra.mxu0 %v1689
        %1691 = vmatprep.subr.mxu0 0.0
        %v1692 = vand.u32 %v1287, 4294901760
        %v1693 = vsub.f32 %v1287, %v1692
        %1694 = vmatpush1.msra.mxu0 %v1693
        %1695 = vmatprep.subr.mxu0 0.0
        %v1696 = vand.u32 %v1286, 4294901760
        %v1697 = vsub.f32 %v1286, %v1696
        %1698 = vmatpush1.msra.mxu0 %v1697
        %1699 = vmatprep.subr.mxu0 0.0
        %1700 = vmatpush2.msra.mxu0 0.0
        %1701 = vmatprep.subr.mxu0 0.0
        %1702 = vmatpush2.msra.mxu0 0.0
        %1703 = vmatprep.subr.mxu0 0.0
        %1704 = vmatpush2.msra.mxu0 0.0
        %1705 = vmatprep.subr.mxu0 0.0
        %1706 = vmatpush2.msra.mxu0 0.0
        %1707 = vmatprep.subr.mxu0 0.0
        %1708 = vmatpush2.msra.mxu0 0.0
        %1709 = vmatprep.subr.mxu0 0.0
        %1710 = vmatpush2.msra.mxu0 0.0
        %1711 = vmatprep.subr.mxu0 0.0
        %1712 = vmatpush2.msra.mxu0 0.0
        %1713 = vmatprep.subr.mxu0 0.0
        %1714 = vmatpush2.msra.mxu0 0.0
        %1715 = vmatprep.subr.mxu0 0.0
        %1716 = vmatpush2.msra.mxu0 0.0
        %1717 = vmatprep.subr.mxu0 0.0
        %1718 = vmatpush2.msra.mxu0 0.0
        %1719 = vmatprep.subr.mxu0 0.0
        %1720 = vmatpush2.msra.mxu0 0.0
        %1721 = vmatprep.subr.mxu0 0.0
        %1722 = vmatpush2.msra.mxu0 0.0
        %1723 = vmatprep.subr.mxu0 0.0
        %1724 = vmatpush2.msra.mxu0 0.0
        %1725 = vmatprep.subr.mxu0 0.0
        %1726 = vmatpush2.msra.mxu0 0.0
        %1727 = vmatprep.subr.mxu0 0.0
        %1728 = vmatpush2.msra.mxu0 0.0
        %1729 = vmatprep.subr.mxu0 0.0
        %1730 = vmatpush2.msra.mxu0 0.0
        %1731 = vmatprep.mubr.f32.mxu0 0.0
        %v1732 = vand.u32 %v1455, 4294901760
        %v1733 = vsub.f32 %v1455, %v1732
        %1734 = vmatmul.mubr.f32.gmra.mxu0 %v1733
        %v1735 = vpop.f32.mrf.mxu0
        %v1736 = vadd.f32 %v1648, %v1735
        %v1737 = vpop.f32.mrf.mxu0
        %1738 = vdwg.mxu0
        %1739 = vmatprep.subr.mxu0 0.0
        %1740 = vmatpush1.msra.mxu0 0.0
        %1741 = vmatprep.subr.mxu0 0.0
        %1742 = vmatpush1.msra.mxu0 0.0
        %1743 = vmatprep.subr.mxu0 0.0
        %1744 = vmatpush1.msra.mxu0 0.0
        %1745 = vmatprep.subr.mxu0 0.0
        %1746 = vmatpush1.msra.mxu0 0.0
        %1747 = vmatprep.subr.mxu0 0.0
        %1748 = vmatpush1.msra.mxu0 0.0
        %1749 = vmatprep.subr.mxu0 0.0
        %1750 = vmatpush1.msra.mxu0 0.0
        %1751 = vmatprep.subr.mxu0 0.0
        %1752 = vmatpush1.msra.mxu0 0.0
        %1753 = vmatprep.subr.mxu0 0.0
        %1754 = vmatpush1.msra.mxu0 0.0
        %1755 = vmatprep.subr.mxu0 0.0
        %v1756 = vand.u32 %v1293, 4294901760
        %1757 = vmatpush1.msra.mxu0 %v1756
        %1758 = vmatprep.subr.mxu0 0.0
        %v1759 = vand.u32 %v1292, 4294901760
        %1760 = vmatpush1.msra.mxu0 %v1759
        %1761 = vmatprep.subr.mxu0 0.0
        %v1762 = vand.u32 %v1291, 4294901760
        %1763 = vmatpush1.msra.mxu0 %v1762
        %1764 = vmatprep.subr.mxu0 0.0
        %v1765 = vand.u32 %v1290, 4294901760
        %1766 = vmatpush1.msra.mxu0 %v1765
        %1767 = vmatprep.subr.mxu0 0.0
        %v1768 = vand.u32 %v1289, 4294901760
        %1769 = vmatpush1.msra.mxu0 %v1768
        %1770 = vmatprep.subr.mxu0 0.0
        %v1771 = vand.u32 %v1288, 4294901760
        %1772 = vmatpush1.msra.mxu0 %v1771
        %1773 = vmatprep.subr.mxu0 0.0
        %v1774 = vand.u32 %v1287, 4294901760
        %1775 = vmatpush1.msra.mxu0 %v1774
        %1776 = vmatprep.subr.mxu0 0.0
        %v1777 = vand.u32 %v1286, 4294901760
        %1778 = vmatpush1.msra.mxu0 %v1777
        %1779 = vmatprep.subr.mxu0 0.0
        %1780 = vmatpush2.msra.mxu0 0.0
        %1781 = vmatprep.subr.mxu0 0.0
        %1782 = vmatpush2.msra.mxu0 0.0
        %1783 = vmatprep.subr.mxu0 0.0
        %1784 = vmatpush2.msra.mxu0 0.0
        %1785 = vmatprep.subr.mxu0 0.0
        %1786 = vmatpush2.msra.mxu0 0.0
        %1787 = vmatprep.subr.mxu0 0.0
        %1788 = vmatpush2.msra.mxu0 0.0
        %1789 = vmatprep.subr.mxu0 0.0
        %1790 = vmatpush2.msra.mxu0 0.0
        %1791 = vmatprep.subr.mxu0 0.0
        %1792 = vmatpush2.msra.mxu0 0.0
        %1793 = vmatprep.subr.mxu0 0.0
        %1794 = vmatpush2.msra.mxu0 0.0
        %1795 = vmatprep.subr.mxu0 0.0
        %1796 = vmatpush2.msra.mxu0 0.0
        %1797 = vmatprep.subr.mxu0 0.0
        %1798 = vmatpush2.msra.mxu0 0.0
        %1799 = vmatprep.subr.mxu0 0.0
        %1800 = vmatpush2.msra.mxu0 0.0
        %1801 = vmatprep.subr.mxu0 0.0
        %1802 = vmatpush2.msra.mxu0 0.0
        %1803 = vmatprep.subr.mxu0 0.0
        %1804 = vmatpush2.msra.mxu0 0.0
        %1805 = vmatprep.subr.mxu0 0.0
        %1806 = vmatpush2.msra.mxu0 0.0
        %1807 = vmatprep.subr.mxu0 0.0
        %1808 = vmatpush2.msra.mxu0 0.0
        %1809 = vmatprep.subr.mxu0 0.0
        %1810 = vmatpush2.msra.mxu0 0.0
        %1811 = vmatprep.mubr.f32.mxu0 0.0
        %v1812 = vand.u32 %v1455, 4294901760
        %v1813 = vsub.f32 %v1455, %v1812
        %v1814 = vand.u32 %v1813, 4294901760
        %1815 = vmatmul.mubr.f32.gmra.mxu0 %v1814
        %v1816 = vpop.f32.mrf.mxu0
        %v1817 = vadd.f32 %v1736, %v1816
        %v1818 = vpop.f32.mrf.mxu0
        %1819 = vdwg.mxu0
        %1820 = vmatprep.subr.mxu0 0.0
        %1821 = vmatpush1.msra.mxu0 0.0
        %1822 = vmatprep.subr.mxu0 0.0
        %1823 = vmatpush1.msra.mxu0 0.0
        %1824 = vmatprep.subr.mxu0 0.0
        %1825 = vmatpush1.msra.mxu0 0.0
        %1826 = vmatprep.subr.mxu0 0.0
        %1827 = vmatpush1.msra.mxu0 0.0
        %1828 = vmatprep.subr.mxu0 0.0
        %1829 = vmatpush1.msra.mxu0 0.0
        %1830 = vmatprep.subr.mxu0 0.0
        %1831 = vmatpush1.msra.mxu0 0.0
        %1832 = vmatprep.subr.mxu0 0.0
        %1833 = vmatpush1.msra.mxu0 0.0
        %1834 = vmatprep.subr.mxu0 0.0
        %1835 = vmatpush1.msra.mxu0 0.0
        %1836 = vmatprep.subr.mxu0 0.0
        %v1837 = vand.u32 %v1293, 4294901760
        %v1838 = vsub.f32 %v1293, %v1837
        %v1839 = vand.u32 %v1838, 4294901760
        %1840 = vmatpush1.msra.mxu0 %v1839
        %1841 = vmatprep.subr.mxu0 0.0
        %v1842 = vand.u32 %v1292, 4294901760
        %v1843 = vsub.f32 %v1292, %v1842
        %v1844 = vand.u32 %v1843, 4294901760
        %1845 = vmatpush1.msra.mxu0 %v1844
        %1846 = vmatprep.subr.mxu0 0.0
        %v1847 = vand.u32 %v1291, 4294901760
        %v1848 = vsub.f32 %v1291, %v1847
        %v1849 = vand.u32 %v1848, 4294901760
        %1850 = vmatpush1.msra.mxu0 %v1849
        %1851 = vmatprep.subr.mxu0 0.0
        %v1852 = vand.u32 %v1290, 4294901760
        %v1853 = vsub.f32 %v1290, %v1852
        %v1854 = vand.u32 %v1853, 4294901760
        %1855 = vmatpush1.msra.mxu0 %v1854
        %1856 = vmatprep.subr.mxu0 0.0
        %v1857 = vand.u32 %v1289, 4294901760
        %v1858 = vsub.f32 %v1289, %v1857
        %v1859 = vand.u32 %v1858, 4294901760
        %1860 = vmatpush1.msra.mxu0 %v1859
        %1861 = vmatprep.subr.mxu0 0.0
        %v1862 = vand.u32 %v1288, 4294901760
        %v1863 = vsub.f32 %v1288, %v1862
        %v1864 = vand.u32 %v1863, 4294901760
        %1865 = vmatpush1.msra.mxu0 %v1864
        %1866 = vmatprep.subr.mxu0 0.0
        %v1867 = vand.u32 %v1287, 4294901760
        %v1868 = vsub.f32 %v1287, %v1867
        %v1869 = vand.u32 %v1868, 4294901760
        %1870 = vmatpush1.msra.mxu0 %v1869
        %1871 = vmatprep.subr.mxu0 0.0
        %v1872 = vand.u32 %v1286, 4294901760
        %v1873 = vsub.f32 %v1286, %v1872
        %v1874 = vand.u32 %v1873, 4294901760
        %1875 = vmatpush1.msra.mxu0 %v1874
        %1876 = vmatprep.subr.mxu0 0.0
        %1877 = vmatpush2.msra.mxu0 0.0
        %1878 = vmatprep.subr.mxu0 0.0
        %1879 = vmatpush2.msra.mxu0 0.0
        %1880 = vmatprep.subr.mxu0 0.0
        %1881 = vmatpush2.msra.mxu0 0.0
        %1882 = vmatprep.subr.mxu0 0.0
        %1883 = vmatpush2.msra.mxu0 0.0
        %1884 = vmatprep.subr.mxu0 0.0
        %1885 = vmatpush2.msra.mxu0 0.0
        %1886 = vmatprep.subr.mxu0 0.0
        %1887 = vmatpush2.msra.mxu0 0.0
        %1888 = vmatprep.subr.mxu0 0.0
        %1889 = vmatpush2.msra.mxu0 0.0
        %1890 = vmatprep.subr.mxu0 0.0
        %1891 = vmatpush2.msra.mxu0 0.0
        %1892 = vmatprep.subr.mxu0 0.0
        %1893 = vmatpush2.msra.mxu0 0.0
        %1894 = vmatprep.subr.mxu0 0.0
        %1895 = vmatpush2.msra.mxu0 0.0
        %1896 = vmatprep.subr.mxu0 0.0
        %1897 = vmatpush2.msra.mxu0 0.0
        %1898 = vmatprep.subr.mxu0 0.0
        %1899 = vmatpush2.msra.mxu0 0.0
        %1900 = vmatprep.subr.mxu0 0.0
        %1901 = vmatpush2.msra.mxu0 0.0
        %1902 = vmatprep.subr.mxu0 0.0
        %1903 = vmatpush2.msra.mxu0 0.0
        %1904 = vmatprep.subr.mxu0 0.0
        %1905 = vmatpush2.msra.mxu0 0.0
        %1906 = vmatprep.subr.mxu0 0.0
        %1907 = vmatpush2.msra.mxu0 0.0
        %1908 = vmatprep.mubr.f32.mxu0 0.0
        %v1909 = vand.u32 %v1455, 4294901760
        %1910 = vmatmul.mubr.f32.gmra.mxu0 %v1909
        %v1911 = vpop.f32.mrf.mxu0
        %v1912 = vadd.f32 %v1817, %v1911
        %v1913 = vpop.f32.mrf.mxu0
        %1914 = vdwg.mxu0
        %1915 = vmatprep.subr.mxu0 0.0
        %1916 = vmatpush1.msra.mxu0 0.0
        %1917 = vmatprep.subr.mxu0 0.0
        %1918 = vmatpush1.msra.mxu0 0.0
        %1919 = vmatprep.subr.mxu0 0.0
        %1920 = vmatpush1.msra.mxu0 0.0
        %1921 = vmatprep.subr.mxu0 0.0
        %1922 = vmatpush1.msra.mxu0 0.0
        %1923 = vmatprep.subr.mxu0 0.0
        %1924 = vmatpush1.msra.mxu0 0.0
        %1925 = vmatprep.subr.mxu0 0.0
        %1926 = vmatpush1.msra.mxu0 0.0
        %1927 = vmatprep.subr.mxu0 0.0
        %1928 = vmatpush1.msra.mxu0 0.0
        %1929 = vmatprep.subr.mxu0 0.0
        %1930 = vmatpush1.msra.mxu0 0.0
        %1931 = vmatprep.subr.mxu0 0.0
        %v1932 = vand.u32 %v1293, 4294901760
        %1933 = vmatpush1.msra.mxu0 %v1932
        %1934 = vmatprep.subr.mxu0 0.0
        %v1935 = vand.u32 %v1292, 4294901760
        %1936 = vmatpush1.msra.mxu0 %v1935
        %1937 = vmatprep.subr.mxu0 0.0
        %v1938 = vand.u32 %v1291, 4294901760
        %1939 = vmatpush1.msra.mxu0 %v1938
        %1940 = vmatprep.subr.mxu0 0.0
        %v1941 = vand.u32 %v1290, 4294901760
        %1942 = vmatpush1.msra.mxu0 %v1941
        %1943 = vmatprep.subr.mxu0 0.0
        %v1944 = vand.u32 %v1289, 4294901760
        %1945 = vmatpush1.msra.mxu0 %v1944
        %1946 = vmatprep.subr.mxu0 0.0
        %v1947 = vand.u32 %v1288, 4294901760
        %1948 = vmatpush1.msra.mxu0 %v1947
        %1949 = vmatprep.subr.mxu0 0.0
        %v1950 = vand.u32 %v1287, 4294901760
        %1951 = vmatpush1.msra.mxu0 %v1950
        %1952 = vmatprep.subr.mxu0 0.0
        %v1953 = vand.u32 %v1286, 4294901760
        %1954 = vmatpush1.msra.mxu0 %v1953
        %1955 = vmatprep.subr.mxu0 0.0
        %1956 = vmatpush2.msra.mxu0 0.0
        %1957 = vmatprep.subr.mxu0 0.0
        %1958 = vmatpush2.msra.mxu0 0.0
        %1959 = vmatprep.subr.mxu0 0.0
        %1960 = vmatpush2.msra.mxu0 0.0
        %1961 = vmatprep.subr.mxu0 0.0
        %1962 = vmatpush2.msra.mxu0 0.0
        %1963 = vmatprep.subr.mxu0 0.0
        %1964 = vmatpush2.msra.mxu0 0.0
        %1965 = vmatprep.subr.mxu0 0.0
        %1966 = vmatpush2.msra.mxu0 0.0
        %1967 = vmatprep.subr.mxu0 0.0
        %1968 = vmatpush2.msra.mxu0 0.0
        %1969 = vmatprep.subr.mxu0 0.0
        %1970 = vmatpush2.msra.mxu0 0.0
        %1971 = vmatprep.subr.mxu0 0.0
        %1972 = vmatpush2.msra.mxu0 0.0
        %1973 = vmatprep.subr.mxu0 0.0
        %1974 = vmatpush2.msra.mxu0 0.0
        %1975 = vmatprep.subr.mxu0 0.0
        %1976 = vmatpush2.msra.mxu0 0.0
        %1977 = vmatprep.subr.mxu0 0.0
        %1978 = vmatpush2.msra.mxu0 0.0
        %1979 = vmatprep.subr.mxu0 0.0
        %1980 = vmatpush2.msra.mxu0 0.0
        %1981 = vmatprep.subr.mxu0 0.0
        %1982 = vmatpush2.msra.mxu0 0.0
        %1983 = vmatprep.subr.mxu0 0.0
        %1984 = vmatpush2.msra.mxu0 0.0
        %1985 = vmatprep.subr.mxu0 0.0
        %1986 = vmatpush2.msra.mxu0 0.0
        %1987 = vmatprep.mubr.f32.mxu0 0.0
        %v1988 = vand.u32 %v1455, 4294901760
        %1989 = vmatmul.mubr.f32.gmra.mxu0 %v1988
        %v1990 = vpop.f32.mrf.mxu0
        %v1991 = vadd.f32 %v1912, %v1990
        %v1992 = vpop.f32.mrf.mxu0
        %1993 = vdwg.mxu0
        %v1994 = vmax.f32 %v1991, 0.0
        %v1995 = vld [vmem:[%s2] sm:$0xf]
        %vm1996 = vcmask 31744
        %v1998 = vsel %vm1996, %v1994, 0
        %vm2000 = vcmask 1043456
        %v2002 = vsel %vm2000, %v1995, 0
        %2004 = vmatprep.subr.mxu0 0.0
        %2005 = vmatpush1.msra.mxu0 0.0
        %2006 = vmatprep.subr.mxu0 0.0
        %2007 = vmatpush1.msra.mxu0 0.0
        %2008 = vmatprep.subr.mxu0 0.0
        %2009 = vmatpush1.msra.mxu0 0.0
        %2010 = vmatprep.subr.mxu0 0.0
        %2011 = vmatpush1.msra.mxu0 0.0
        %2012 = vmatprep.subr.mxu0 0.0
        %2013 = vmatpush1.msra.mxu0 0.0
        %2014 = vmatprep.subr.mxu0 0.0
        %2015 = vmatpush1.msra.mxu0 0.0
        %2016 = vmatprep.subr.mxu0 0.0
        %2017 = vmatpush1.msra.mxu0 0.0
        %2018 = vmatprep.subr.mxu0 0.0
        %2019 = vmatpush1.msra.mxu0 0.0
        %2020 = vmatprep.subr.mxu0 0.0
        %2021 = vmatpush1.msra.mxu0 0.0
        %2022 = vmatprep.subr.mxu0 0.0
        %2023 = vmatpush1.msra.mxu0 0.0
        %2024 = vmatprep.subr.mxu0 0.0
        %2025 = vmatpush1.msra.mxu0 0.0
        %2026 = vmatprep.subr.mxu0 0.0
        %2027 = vmatpush1.msra.mxu0 0.0
        %2028 = vmatprep.subr.mxu0 0.0
        %2029 = vmatpush1.msra.mxu0 0.0
        %2030 = vmatprep.subr.mxu0 0.0
        %2031 = vmatpush1.msra.mxu0 0.0
        %2032 = vmatprep.subr.mxu0 0.0
        %2033 = vmatpush1.msra.mxu0 0.0
        %2034 = vmatprep.subr.mxu0 0.0
        %v2035 = vand.u32 %v2002, 4294901760
        %2036 = vmatpush1.msra.mxu0 %v2035
        %2037 = vmatprep.subr.mxu0 0.0
        %2038 = vmatpush2.msra.mxu0 0.0
        %2039 = vmatprep.subr.mxu0 0.0
        %2040 = vmatpush2.msra.mxu0 0.0
        %2041 = vmatprep.subr.mxu0 0.0
        %2042 = vmatpush2.msra.mxu0 0.0
        %2043 = vmatprep.subr.mxu0 0.0
        %2044 = vmatpush2.msra.mxu0 0.0
        %2045 = vmatprep.subr.mxu0 0.0
        %2046 = vmatpush2.msra.mxu0 0.0
        %2047 = vmatprep.subr.mxu0 0.0
        %2048 = vmatpush2.msra.mxu0 0.0
        %2049 = vmatprep.subr.mxu0 0.0
        %2050 = vmatpush2.msra.mxu0 0.0
        %2051 = vmatprep.subr.mxu0 0.0
        %2052 = vmatpush2.msra.mxu0 0.0
        %2053 = vmatprep.subr.mxu0 0.0
        %2054 = vmatpush2.msra.mxu0 0.0
        %2055 = vmatprep.subr.mxu0 0.0
        %2056 = vmatpush2.msra.mxu0 0.0
        %2057 = vmatprep.subr.mxu0 0.0
        %2058 = vmatpush2.msra.mxu0 0.0
        %2059 = vmatprep.subr.mxu0 0.0
        %2060 = vmatpush2.msra.mxu0 0.0
        %2061 = vmatprep.subr.mxu0 0.0
        %2062 = vmatpush2.msra.mxu0 0.0
        %2063 = vmatprep.subr.mxu0 0.0
        %2064 = vmatpush2.msra.mxu0 0.0
        %2065 = vmatprep.subr.mxu0 0.0
        %2066 = vmatpush2.msra.mxu0 0.0
        %2067 = vmatprep.subr.mxu0 0.0
        %2068 = vmatpush2.msra.mxu0 0.0
        %2069 = vmatprep.mubr.f32.mxu0 0.0
        %v2070 = vand.u32 %v1998, 4294901760
        %v2071 = vsub.f32 %v1998, %v2070
        %v2072 = vand.u32 %v2071, 4294901760
        %v2073 = vsub.f32 %v2071, %v2072
        %v2074 = vand.u32 %v2073, 4294901760
        %2075 = vmatmul.mubr.f32.gmra.mxu0 %v2074
        %v2076 = vpop.f32.mrf.mxu0
        %v2077 = vadd.f32 0.0, %v2076
        %v2078 = vpop.f32.mrf.mxu0
        %2079 = vdwg.mxu0
        %2080 = vmatprep.subr.mxu0 0.0
        %2081 = vmatpush1.msra.mxu0 0.0
        %2082 = vmatprep.subr.mxu0 0.0
        %2083 = vmatpush1.msra.mxu0 0.0
        %2084 = vmatprep.subr.mxu0 0.0
        %2085 = vmatpush1.msra.mxu0 0.0
        %2086 = vmatprep.subr.mxu0 0.0
        %2087 = vmatpush1.msra.mxu0 0.0
        %2088 = vmatprep.subr.mxu0 0.0
        %2089 = vmatpush1.msra.mxu0 0.0
        %2090 = vmatprep.subr.mxu0 0.0
        %2091 = vmatpush1.msra.mxu0 0.0
        %2092 = vmatprep.subr.mxu0 0.0
        %2093 = vmatpush1.msra.mxu0 0.0
        %2094 = vmatprep.subr.mxu0 0.0
        %2095 = vmatpush1.msra.mxu0 0.0
        %2096 = vmatprep.subr.mxu0 0.0
        %2097 = vmatpush1.msra.mxu0 0.0
        %2098 = vmatprep.subr.mxu0 0.0
        %2099 = vmatpush1.msra.mxu0 0.0
        %2100 = vmatprep.subr.mxu0 0.0
        %2101 = vmatpush1.msra.mxu0 0.0
        %2102 = vmatprep.subr.mxu0 0.0
        %2103 = vmatpush1.msra.mxu0 0.0
        %2104 = vmatprep.subr.mxu0 0.0
        %2105 = vmatpush1.msra.mxu0 0.0
        %2106 = vmatprep.subr.mxu0 0.0
        %2107 = vmatpush1.msra.mxu0 0.0
        %2108 = vmatprep.subr.mxu0 0.0
        %2109 = vmatpush1.msra.mxu0 0.0
        %2110 = vmatprep.subr.mxu0 0.0
        %v2111 = vand.u32 %v2002, 4294901760
        %v2112 = vsub.f32 %v2002, %v2111
        %v2113 = vand.u32 %v2112, 4294901760
        %v2114 = vsub.f32 %v2112, %v2113
        %v2115 = vand.u32 %v2114, 4294901760
        %2116 = vmatpush1.msra.mxu0 %v2115
        %2117 = vmatprep.subr.mxu0 0.0
        %2118 = vmatpush2.msra.mxu0 0.0
        %2119 = vmatprep.subr.mxu0 0.0
        %2120 = vmatpush2.msra.mxu0 0.0
        %2121 = vmatprep.subr.mxu0 0.0
        %2122 = vmatpush2.msra.mxu0 0.0
        %2123 = vmatprep.subr.mxu0 0.0
        %2124 = vmatpush2.msra.mxu0 0.0
        %2125 = vmatprep.subr.mxu0 0.0
        %2126 = vmatpush2.msra.mxu0 0.0
        %2127 = vmatprep.subr.mxu0 0.0
        %2128 = vmatpush2.msra.mxu0 0.0
        %2129 = vmatprep.subr.mxu0 0.0
        %2130 = vmatpush2.msra.mxu0 0.0
        %2131 = vmatprep.subr.mxu0 0.0
        %2132 = vmatpush2.msra.mxu0 0.0
        %2133 = vmatprep.subr.mxu0 0.0
        %2134 = vmatpush2.msra.mxu0 0.0
        %2135 = vmatprep.subr.mxu0 0.0
        %2136 = vmatpush2.msra.mxu0 0.0
        %2137 = vmatprep.subr.mxu0 0.0
        %2138 = vmatpush2.msra.mxu0 0.0
        %2139 = vmatprep.subr.mxu0 0.0
        %2140 = vmatpush2.msra.mxu0 0.0
        %2141 = vmatprep.subr.mxu0 0.0
        %2142 = vmatpush2.msra.mxu0 0.0
        %2143 = vmatprep.subr.mxu0 0.0
        %2144 = vmatpush2.msra.mxu0 0.0
        %2145 = vmatprep.subr.mxu0 0.0
        %2146 = vmatpush2.msra.mxu0 0.0
        %2147 = vmatprep.subr.mxu0 0.0
        %2148 = vmatpush2.msra.mxu0 0.0
        %2149 = vmatprep.mubr.f32.mxu0 0.0
        %v2150 = vand.u32 %v1998, 4294901760
        %2151 = vmatmul.mubr.f32.gmra.mxu0 %v2150
        %v2152 = vpop.f32.mrf.mxu0
        %v2153 = vadd.f32 %v2077, %v2152
        %v2154 = vpop.f32.mrf.mxu0
        %2155 = vdwg.mxu0
        %2156 = vmatprep.subr.mxu0 0.0
        %2157 = vmatpush1.msra.mxu0 0.0
        %2158 = vmatprep.subr.mxu0 0.0
        %2159 = vmatpush1.msra.mxu0 0.0
        %2160 = vmatprep.subr.mxu0 0.0
        %2161 = vmatpush1.msra.mxu0 0.0
        %2162 = vmatprep.subr.mxu0 0.0
        %2163 = vmatpush1.msra.mxu0 0.0
        %2164 = vmatprep.subr.mxu0 0.0
        %2165 = vmatpush1.msra.mxu0 0.0
        %2166 = vmatprep.subr.mxu0 0.0
        %2167 = vmatpush1.msra.mxu0 0.0
        %2168 = vmatprep.subr.mxu0 0.0
        %2169 = vmatpush1.msra.mxu0 0.0
        %2170 = vmatprep.subr.mxu0 0.0
        %2171 = vmatpush1.msra.mxu0 0.0
        %2172 = vmatprep.subr.mxu0 0.0
        %2173 = vmatpush1.msra.mxu0 0.0
        %2174 = vmatprep.subr.mxu0 0.0
        %2175 = vmatpush1.msra.mxu0 0.0
        %2176 = vmatprep.subr.mxu0 0.0
        %2177 = vmatpush1.msra.mxu0 0.0
        %2178 = vmatprep.subr.mxu0 0.0
        %2179 = vmatpush1.msra.mxu0 0.0
        %2180 = vmatprep.subr.mxu0 0.0
        %2181 = vmatpush1.msra.mxu0 0.0
        %2182 = vmatprep.subr.mxu0 0.0
        %2183 = vmatpush1.msra.mxu0 0.0
        %2184 = vmatprep.subr.mxu0 0.0
        %2185 = vmatpush1.msra.mxu0 0.0
        %2186 = vmatprep.subr.mxu0 0.0
        %v2187 = vand.u32 %v2002, 4294901760
        %v2188 = vsub.f32 %v2002, %v2187
        %2189 = vmatpush1.msra.mxu0 %v2188
        %2190 = vmatprep.subr.mxu0 0.0
        %2191 = vmatpush2.msra.mxu0 0.0
        %2192 = vmatprep.subr.mxu0 0.0
        %2193 = vmatpush2.msra.mxu0 0.0
        %2194 = vmatprep.subr.mxu0 0.0
        %2195 = vmatpush2.msra.mxu0 0.0
        %2196 = vmatprep.subr.mxu0 0.0
        %2197 = vmatpush2.msra.mxu0 0.0
        %2198 = vmatprep.subr.mxu0 0.0
        %2199 = vmatpush2.msra.mxu0 0.0
        %2200 = vmatprep.subr.mxu0 0.0
        %2201 = vmatpush2.msra.mxu0 0.0
        %2202 = vmatprep.subr.mxu0 0.0
        %2203 = vmatpush2.msra.mxu0 0.0
        %2204 = vmatprep.subr.mxu0 0.0
        %2205 = vmatpush2.msra.mxu0 0.0
        %2206 = vmatprep.subr.mxu0 0.0
        %2207 = vmatpush2.msra.mxu0 0.0
        %2208 = vmatprep.subr.mxu0 0.0
        %2209 = vmatpush2.msra.mxu0 0.0
        %2210 = vmatprep.subr.mxu0 0.0
        %2211 = vmatpush2.msra.mxu0 0.0
        %2212 = vmatprep.subr.mxu0 0.0
        %2213 = vmatpush2.msra.mxu0 0.0
        %2214 = vmatprep.subr.mxu0 0.0
        %2215 = vmatpush2.msra.mxu0 0.0
        %2216 = vmatprep.subr.mxu0 0.0
        %2217 = vmatpush2.msra.mxu0 0.0
        %2218 = vmatprep.subr.mxu0 0.0
        %2219 = vmatpush2.msra.mxu0 0.0
        %2220 = vmatprep.subr.mxu0 0.0
        %2221 = vmatpush2.msra.mxu0 0.0
        %2222 = vmatprep.mubr.f32.mxu0 0.0
        %v2223 = vand.u32 %v1998, 4294901760
        %v2224 = vsub.f32 %v1998, %v2223
        %2225 = vmatmul.mubr.f32.gmra.mxu0 %v2224
        %v2226 = vpop.f32.mrf.mxu0
        %v2227 = vadd.f32 %v2153, %v2226
        %v2228 = vpop.f32.mrf.mxu0
        %2229 = vdwg.mxu0
        %2230 = vmatprep.subr.mxu0 0.0
        %2231 = vmatpush1.msra.mxu0 0.0
        %2232 = vmatprep.subr.mxu0 0.0
        %2233 = vmatpush1.msra.mxu0 0.0
        %2234 = vmatprep.subr.mxu0 0.0
        %2235 = vmatpush1.msra.mxu0 0.0
        %2236 = vmatprep.subr.mxu0 0.0
        %2237 = vmatpush1.msra.mxu0 0.0
        %2238 = vmatprep.subr.mxu0 0.0
        %2239 = vmatpush1.msra.mxu0 0.0
        %2240 = vmatprep.subr.mxu0 0.0
        %2241 = vmatpush1.msra.mxu0 0.0
        %2242 = vmatprep.subr.mxu0 0.0
        %2243 = vmatpush1.msra.mxu0 0.0
        %2244 = vmatprep.subr.mxu0 0.0
        %2245 = vmatpush1.msra.mxu0 0.0
        %2246 = vmatprep.subr.mxu0 0.0
        %2247 = vmatpush1.msra.mxu0 0.0
        %2248 = vmatprep.subr.mxu0 0.0
        %2249 = vmatpush1.msra.mxu0 0.0
        %2250 = vmatprep.subr.mxu0 0.0
        %2251 = vmatpush1.msra.mxu0 0.0
        %2252 = vmatprep.subr.mxu0 0.0
        %2253 = vmatpush1.msra.mxu0 0.0
        %2254 = vmatprep.subr.mxu0 0.0
        %2255 = vmatpush1.msra.mxu0 0.0
        %2256 = vmatprep.subr.mxu0 0.0
        %2257 = vmatpush1.msra.mxu0 0.0
        %2258 = vmatprep.subr.mxu0 0.0
        %2259 = vmatpush1.msra.mxu0 0.0
        %2260 = vmatprep.subr.mxu0 0.0
        %v2261 = vand.u32 %v2002, 4294901760
        %2262 = vmatpush1.msra.mxu0 %v2261
        %2263 = vmatprep.subr.mxu0 0.0
        %2264 = vmatpush2.msra.mxu0 0.0
        %2265 = vmatprep.subr.mxu0 0.0
        %2266 = vmatpush2.msra.mxu0 0.0
        %2267 = vmatprep.subr.mxu0 0.0
        %2268 = vmatpush2.msra.mxu0 0.0
        %2269 = vmatprep.subr.mxu0 0.0
        %2270 = vmatpush2.msra.mxu0 0.0
        %2271 = vmatprep.subr.mxu0 0.0
        %2272 = vmatpush2.msra.mxu0 0.0
        %2273 = vmatprep.subr.mxu0 0.0
        %2274 = vmatpush2.msra.mxu0 0.0
        %2275 = vmatprep.subr.mxu0 0.0
        %2276 = vmatpush2.msra.mxu0 0.0
        %2277 = vmatprep.subr.mxu0 0.0
        %2278 = vmatpush2.msra.mxu0 0.0
        %2279 = vmatprep.subr.mxu0 0.0
        %2280 = vmatpush2.msra.mxu0 0.0
        %2281 = vmatprep.subr.mxu0 0.0
        %2282 = vmatpush2.msra.mxu0 0.0
        %2283 = vmatprep.subr.mxu0 0.0
        %2284 = vmatpush2.msra.mxu0 0.0
        %2285 = vmatprep.subr.mxu0 0.0
        %2286 = vmatpush2.msra.mxu0 0.0
        %2287 = vmatprep.subr.mxu0 0.0
        %2288 = vmatpush2.msra.mxu0 0.0
        %2289 = vmatprep.subr.mxu0 0.0
        %2290 = vmatpush2.msra.mxu0 0.0
        %2291 = vmatprep.subr.mxu0 0.0
        %2292 = vmatpush2.msra.mxu0 0.0
        %2293 = vmatprep.subr.mxu0 0.0
        %2294 = vmatpush2.msra.mxu0 0.0
        %2295 = vmatprep.mubr.f32.mxu0 0.0
        %v2296 = vand.u32 %v1998, 4294901760
        %v2297 = vsub.f32 %v1998, %v2296
        %v2298 = vand.u32 %v2297, 4294901760
        %2299 = vmatmul.mubr.f32.gmra.mxu0 %v2298
        %v2300 = vpop.f32.mrf.mxu0
        %v2301 = vadd.f32 %v2227, %v2300
        %v2302 = vpop.f32.mrf.mxu0
        %2303 = vdwg.mxu0
        %2304 = vmatprep.subr.mxu0 0.0
        %2305 = vmatpush1.msra.mxu0 0.0
        %2306 = vmatprep.subr.mxu0 0.0
        %2307 = vmatpush1.msra.mxu0 0.0
        %2308 = vmatprep.subr.mxu0 0.0
        %2309 = vmatpush1.msra.mxu0 0.0
        %2310 = vmatprep.subr.mxu0 0.0
        %2311 = vmatpush1.msra.mxu0 0.0
        %2312 = vmatprep.subr.mxu0 0.0
        %2313 = vmatpush1.msra.mxu0 0.0
        %2314 = vmatprep.subr.mxu0 0.0
        %2315 = vmatpush1.msra.mxu0 0.0
        %2316 = vmatprep.subr.mxu0 0.0
        %2317 = vmatpush1.msra.mxu0 0.0
        %2318 = vmatprep.subr.mxu0 0.0
        %2319 = vmatpush1.msra.mxu0 0.0
        %2320 = vmatprep.subr.mxu0 0.0
        %2321 = vmatpush1.msra.mxu0 0.0
        %2322 = vmatprep.subr.mxu0 0.0
        %2323 = vmatpush1.msra.mxu0 0.0
        %2324 = vmatprep.subr.mxu0 0.0
        %2325 = vmatpush1.msra.mxu0 0.0
        %2326 = vmatprep.subr.mxu0 0.0
        %2327 = vmatpush1.msra.mxu0 0.0
        %2328 = vmatprep.subr.mxu0 0.0
        %2329 = vmatpush1.msra.mxu0 0.0
        %2330 = vmatprep.subr.mxu0 0.0
        %2331 = vmatpush1.msra.mxu0 0.0
        %2332 = vmatprep.subr.mxu0 0.0
        %2333 = vmatpush1.msra.mxu0 0.0
        %2334 = vmatprep.subr.mxu0 0.0
        %v2335 = vand.u32 %v2002, 4294901760
        %v2336 = vsub.f32 %v2002, %v2335
        %v2337 = vand.u32 %v2336, 4294901760
        %2338 = vmatpush1.msra.mxu0 %v2337
        %2339 = vmatprep.subr.mxu0 0.0
        %2340 = vmatpush2.msra.mxu0 0.0
        %2341 = vmatprep.subr.mxu0 0.0
        %2342 = vmatpush2.msra.mxu0 0.0
        %2343 = vmatprep.subr.mxu0 0.0
        %2344 = vmatpush2.msra.mxu0 0.0
        %2345 = vmatprep.subr.mxu0 0.0
        %2346 = vmatpush2.msra.mxu0 0.0
        %2347 = vmatprep.subr.mxu0 0.0
        %2348 = vmatpush2.msra.mxu0 0.0
        %2349 = vmatprep.subr.mxu0 0.0
        %2350 = vmatpush2.msra.mxu0 0.0
        %2351 = vmatprep.subr.mxu0 0.0
        %2352 = vmatpush2.msra.mxu0 0.0
        %2353 = vmatprep.subr.mxu0 0.0
        %2354 = vmatpush2.msra.mxu0 0.0
        %2355 = vmatprep.subr.mxu0 0.0
        %2356 = vmatpush2.msra.mxu0 0.0
        %2357 = vmatprep.subr.mxu0 0.0
        %2358 = vmatpush2.msra.mxu0 0.0
        %2359 = vmatprep.subr.mxu0 0.0
        %2360 = vmatpush2.msra.mxu0 0.0
        %2361 = vmatprep.subr.mxu0 0.0
        %2362 = vmatpush2.msra.mxu0 0.0
        %2363 = vmatprep.subr.mxu0 0.0
        %2364 = vmatpush2.msra.mxu0 0.0
        %2365 = vmatprep.subr.mxu0 0.0
        %2366 = vmatpush2.msra.mxu0 0.0
        %2367 = vmatprep.subr.mxu0 0.0
        %2368 = vmatpush2.msra.mxu0 0.0
        %2369 = vmatprep.subr.mxu0 0.0
        %2370 = vmatpush2.msra.mxu0 0.0
        %2371 = vmatprep.mubr.f32.mxu0 0.0
        %v2372 = vand.u32 %v1998, 4294901760
        %2373 = vmatmul.mubr.f32.gmra.mxu0 %v2372
        %v2374 = vpop.f32.mrf.mxu0
        %v2375 = vadd.f32 %v2301, %v2374
        %v2376 = vpop.f32.mrf.mxu0
        %2377 = vdwg.mxu0
        %2378 = vmatprep.subr.mxu0 0.0
        %2379 = vmatpush1.msra.mxu0 0.0
        %2380 = vmatprep.subr.mxu0 0.0
        %2381 = vmatpush1.msra.mxu0 0.0
        %2382 = vmatprep.subr.mxu0 0.0
        %2383 = vmatpush1.msra.mxu0 0.0
        %2384 = vmatprep.subr.mxu0 0.0
        %2385 = vmatpush1.msra.mxu0 0.0
        %2386 = vmatprep.subr.mxu0 0.0
        %2387 = vmatpush1.msra.mxu0 0.0
        %2388 = vmatprep.subr.mxu0 0.0
        %2389 = vmatpush1.msra.mxu0 0.0
        %2390 = vmatprep.subr.mxu0 0.0
        %2391 = vmatpush1.msra.mxu0 0.0
        %2392 = vmatprep.subr.mxu0 0.0
        %2393 = vmatpush1.msra.mxu0 0.0
        %2394 = vmatprep.subr.mxu0 0.0
        %2395 = vmatpush1.msra.mxu0 0.0
        %2396 = vmatprep.subr.mxu0 0.0
        %2397 = vmatpush1.msra.mxu0 0.0
        %2398 = vmatprep.subr.mxu0 0.0
        %2399 = vmatpush1.msra.mxu0 0.0
        %2400 = vmatprep.subr.mxu0 0.0
        %2401 = vmatpush1.msra.mxu0 0.0
        %2402 = vmatprep.subr.mxu0 0.0
        %2403 = vmatpush1.msra.mxu0 0.0
        %2404 = vmatprep.subr.mxu0 0.0
        %2405 = vmatpush1.msra.mxu0 0.0
        %2406 = vmatprep.subr.mxu0 0.0
        %2407 = vmatpush1.msra.mxu0 0.0
        %2408 = vmatprep.subr.mxu0 0.0
        %v2409 = vand.u32 %v2002, 4294901760
        %2410 = vmatpush1.msra.mxu0 %v2409
        %2411 = vmatprep.subr.mxu0 0.0
        %2412 = vmatpush2.msra.mxu0 0.0
        %2413 = vmatprep.subr.mxu0 0.0
        %2414 = vmatpush2.msra.mxu0 0.0
        %2415 = vmatprep.subr.mxu0 0.0
        %2416 = vmatpush2.msra.mxu0 0.0
        %2417 = vmatprep.subr.mxu0 0.0
        %2418 = vmatpush2.msra.mxu0 0.0
        %2419 = vmatprep.subr.mxu0 0.0
        %2420 = vmatpush2.msra.mxu0 0.0
        %2421 = vmatprep.subr.mxu0 0.0
        %2422 = vmatpush2.msra.mxu0 0.0
        %2423 = vmatprep.subr.mxu0 0.0
        %2424 = vmatpush2.msra.mxu0 0.0
        %2425 = vmatprep.subr.mxu0 0.0
        %2426 = vmatpush2.msra.mxu0 0.0
        %2427 = vmatprep.subr.mxu0 0.0
        %2428 = vmatpush2.msra.mxu0 0.0
        %2429 = vmatprep.subr.mxu0 0.0
        %2430 = vmatpush2.msra.mxu0 0.0
        %2431 = vmatprep.subr.mxu0 0.0
        %2432 = vmatpush2.msra.mxu0 0.0
        %2433 = vmatprep.subr.mxu0 0.0
        %2434 = vmatpush2.msra.mxu0 0.0
        %2435 = vmatprep.subr.mxu0 0.0
        %2436 = vmatpush2.msra.mxu0 0.0
        %2437 = vmatprep.subr.mxu0 0.0
        %2438 = vmatpush2.msra.mxu0 0.0
        %2439 = vmatprep.subr.mxu0 0.0
        %2440 = vmatpush2.msra.mxu0 0.0
        %2441 = vmatprep.subr.mxu0 0.0
        %2442 = vmatpush2.msra.mxu0 0.0
        %2443 = vmatprep.mubr.f32.mxu0 0.0
        %v2444 = vand.u32 %v1998, 4294901760
        %2445 = vmatmul.mubr.f32.gmra.mxu0 %v2444
        %v2446 = vpop.f32.mrf.mxu0
        %v2447 = vadd.f32 %v2375, %v2446
        %v2448 = vpop.f32.mrf.mxu0
        %2449 = vdwg.mxu0
        %v2450 = vxor.u32 %v2447, 2147483648
        %v2451 = vmul.f32 %v2450, 1.442695
        %v2452 = vpow.pop %v2451
        %v2453 = vadd.f32 %v2452, 1.0
        %v2454 = vrcp.pop %v2453
        %v2455 = vmul.f32 1.0, %v2454
        %v2456 = vlaneseq
        %v2457 = vshrl.u32 %v2456, 7
        %v2458 = vsub.s32 0, %v2457
        %v2459 = vrot.slane %v2455, %v2458
        %2461 = vbcast.lane.b32.xlu0 %v2459, 256
        %v2462 = vpop.permute.xlu0 %2461
        %s2464 = sor.u32 256, 8
        %2465 = vbcast.lane.b32.xlu0 %v2459, %s2464
        %v2466 = vpop.permute.xlu0 %2465
        %s2468 = sor.u32 256, 16
        %2469 = vbcast.lane.b32.xlu0 %v2459, %s2468
        %v2470 = vpop.permute.xlu0 %2469
        %s2472 = sor.u32 256, 24
        %2473 = vbcast.lane.b32.xlu0 %v2459, %s2472
        %v2474 = vpop.permute.xlu0 %2473
        %s2476 = sor.u32 256, 32
        %2477 = vbcast.lane.b32.xlu0 %v2459, %s2476
        %v2478 = vpop.permute.xlu0 %2477
        %s2480 = sor.u32 256, 40
        %2481 = vbcast.lane.b32.xlu0 %v2459, %s2480
        %v2482 = vpop.permute.xlu0 %2481
        %s2484 = sor.u32 256, 48
        %2485 = vbcast.lane.b32.xlu0 %v2459, %s2484
        %v2486 = vpop.permute.xlu0 %2485
        %s2488 = sor.u32 256, 56
        %2489 = vbcast.lane.b32.xlu0 %v2459, %s2488
        %v2490 = vpop.permute.xlu0 %2489
        %v2491 = vlaneseq
        %v2492 = vshrl.u32 %v2491, 7
        %v2493 = vsub.s32 1, %v2492
        %v2494 = vrot.slane %v2455, %v2493
        %2496 = vbcast.lane.b32.xlu0 %v2494, 256
        %v2497 = vpop.permute.xlu0 %2496
        %s2499 = sor.u32 256, 8
        %2500 = vbcast.lane.b32.xlu0 %v2494, %s2499
        %v2501 = vpop.permute.xlu0 %2500
        %s2503 = sor.u32 256, 16
        %2504 = vbcast.lane.b32.xlu0 %v2494, %s2503
        %v2505 = vpop.permute.xlu0 %2504
        %s2507 = sor.u32 256, 24
        %2508 = vbcast.lane.b32.xlu0 %v2494, %s2507
        %v2509 = vpop.permute.xlu0 %2508
        %s2511 = sor.u32 256, 32
        %2512 = vbcast.lane.b32.xlu0 %v2494, %s2511
        %v2513 = vpop.permute.xlu0 %2512
        %s2515 = sor.u32 256, 40
        %2516 = vbcast.lane.b32.xlu0 %v2494, %s2515
        %v2517 = vpop.permute.xlu0 %2516
        %s2519 = sor.u32 256, 48
        %2520 = vbcast.lane.b32.xlu0 %v2494, %s2519
        %v2521 = vpop.permute.xlu0 %2520
        %s2523 = sor.u32 256, 56
        %2524 = vbcast.lane.b32.xlu0 %v2494, %s2523
        %v2525 = vpop.permute.xlu0 %2524
        %v2526 = vmul.f32 %v192, %v2462
        %v2527 = vmul.f32 %v193, %v2466
        %v2528 = vmul.f32 %v194, %v2470
        %v2529 = vmul.f32 %v195, %v2474
        %v2530 = vmul.f32 %v196, %v2478
        %v2531 = vmul.f32 %v197, %v2482
        %v2532 = vmul.f32 %v198, %v2486
        %v2533 = vmul.f32 %v199, %v2490
        %v2534 = vmul.f32 %v200, %v2497
        %v2535 = vmul.f32 %v201, %v2501
        %v2536 = vmul.f32 %v202, %v2505
        %v2537 = vmul.f32 %v203, %v2509
        %v2538 = vmul.f32 %v204, %v2513
        %v2539 = vmul.f32 %v205, %v2517
        %v2540 = vmul.f32 %v206, %v2521
        %v2541 = vmul.f32 %v207, %v2525
        %2542 = vst [vmem:[%s189] sm:$0xff] %v2526
        %2543 = vst [vmem:[%s189 + $0x8] sm:$0xff] %v2527
        %2544 = vst [vmem:[%s189 + $0x10] sm:$0xff] %v2528
        %2545 = vst [vmem:[%s189 + $0x18] sm:$0xff] %v2529
        %2546 = vst [vmem:[%s189 + $0x20] sm:$0xff] %v2530
        %2547 = vst [vmem:[%s189 + $0x28] sm:$0xff] %v2531
        %2548 = vst [vmem:[%s189 + $0x30] sm:$0xff] %v2532
        %2549 = vst [vmem:[%s189 + $0x38] sm:$0xff] %v2533
        %2550 = vst [vmem:[%s189 + $0x40] sm:$0xff] %v2534
        %2551 = vst [vmem:[%s189 + $0x48] sm:$0xff] %v2535
        %2552 = vst [vmem:[%s189 + $0x50] sm:$0xff] %v2536
        %2553 = vst [vmem:[%s189 + $0x58] sm:$0xff] %v2537
        %2554 = vst [vmem:[%s189 + $0x60] sm:$0xff] %v2538
        %2555 = vst [vmem:[%s189 + $0x68] sm:$0xff] %v2539
        %2556 = vst [vmem:[%s189 + $0x70] sm:$0xff] %v2540
        %2557 = vst [vmem:[%s189 + $0x78] sm:$0xff] %v2541
        %s2558 = sand.u32 %s96, 1
        %s2559 = scalar_lea.sflag [#allocation4], %s2558
        %s2560 = sand.u32 %s96, 1
        %s2561 = smul.addr %s2560, 128
        %s2562 = scalar_lea.vmem [#allocation5], %s2561
        // Predicated region
        $region37: #{tpu_custom_call.1} parent=31 // pred_check
          %p2563 = pneg %p106
        $region38: #{tpu_custom_call.1} parent=31 // pred_check_branch
          %2565 = sbr.rel (%p2563) target = $region40
        $region39: #{tpu_custom_call.1} parent=31 // pred_region
          %s2566 = smul.u32 2, %s20
          %s2568 = ssub.s32 2048, 2048
          %2569 = vsyncadd %s2559, %s2568
          %s2570 = smul.addr %s2566, 8
          %s2571 = smul.addr %s2570, 128
          %s2572 = scalar_lea.hbm %s3, %s2571
          %s2573 = sshll.u32 %s2562, 4
          %s2574 = int_to_ptr.vmem [resolvable:$true] %s2573
          %2579 = dma.vmem_to_hbm [thread:$0]  %s2574, 2048, %s2572, %s2559, 128, 128, 8
        $region40: #{tpu_custom_call.1} parent=31 // pred_fallthru
          _
      $region32: #{tpu_custom_call.1} parent=5 // pred_fallthru
        _
      %p2580 = scmp.le.s32.totalorder 2, %s15
      // Predicated region
      $region41: #{tpu_custom_call.1} parent=5 // pred_check
        %p2581 = pneg %p2580
      $region42: #{tpu_custom_call.1} parent=5 // pred_check_branch
        %2583 = sbr.rel (%p2581) target = $region44
      $region43: #{tpu_custom_call.1} parent=5 // pred_region
        %s2584 = ssub.s32 %s15, 2
        // Predicated region
        $region45: #{tpu_custom_call.1} parent=43 // pred_check
          %p2585 = pneg %p112
        $region46: #{tpu_custom_call.1} parent=43 // pred_check_branch
          %2587 = sbr.rel (%p2585) target = $region48
        $region47: #{tpu_custom_call.1} parent=43 // pred_region
          %s2588 = sand.u32 %s97, 1
          %s2589 = scalar_lea.sflag [#allocation4], %s2588
          %s2590 = sand.u32 %s97, 1
          %s2591 = smul.addr %s2590, 128
          %s2592 = scalar_lea.vmem [#allocation5], %s2591
          %2593 = dma.done %s2589, 2048
        $region48: #{tpu_custom_call.1} parent=43 // pred_fallthru
          _
      $region44: #{tpu_custom_call.1} parent=5 // pred_fallthru
        _
    $region6: #{tpu_custom_call.1} parent=1 // loop_footer
      %s19 = sadd.s32 1, %s15
    $region7: #{tpu_custom_call.1} parent=1 // loop_footer_branch
      %14 = sbr.rel target = $region3
    $region8: #{tpu_custom_call.1} parent=1 // loop_exit
      _
    %2594 = vsyncpa [#allocation3], 1
    %s2595 = scalar_lea.sflag [#allocation3], 1
    %2596 = vsyncpa %s2595, 1
    %2597 = vsyncpa [#allocation4], 1
    %s2598 = scalar_lea.sflag [#allocation4], 1
    %2599 = vsyncpa %s2598, 1

</llo_original>
